<compile_context>
chip_gen: v7x
topology: tpu7x:2x2x1
jax: 0.10.0
libtpu: 0.0.40
codegen_flags: <defaults>
</compile_context>

<pallas_src>
import jax
import jax.numpy as jnp
from jax import lax
from jax.experimental import pallas as pl
from jax.experimental.pallas import tpu as pltpu

# ---- config (stand-in for ./config.json) ----
block_length = 8                                  # T
d_model      = 32                                 # C
groups       = 2
heads        = 4
head_dim     = d_model // heads                   # 8
kv_dim       = (d_model * groups) // heads        # 16 = groups * head_dim
h2g          = heads // groups                    # heads per KV group
assert heads % groups == 0 and d_model % heads == 0

NEG_FILL = float(jnp.finfo(jnp.float32).min)      # finite mask fill (NaN-safe)


def gqa_kernel(x_ref, w_ref, o_ref):
    """Whole batch in one invocation: fused QKV projection + grouped causal attention.

    x_ref : (B, T, C)            in VMEM
    w_ref : (C, C + 2*kv_dim)    fused [Wq | Wk | Wv], pre-transposed ([in, out])
    o_ref : (B, T, C)
    """
    B, T, C = x_ref.shape
    scale = head_dim ** (-0.5)

    # ---- one fused projection matmul over the flattened batch (B*T, C) ----
    x2 = x_ref[...].reshape(B * T, C)
    qkv = jnp.dot(x2, w_ref[...], preferred_element_type=jnp.float32)   # (B*T, C+2*kv)

    q = (qkv[:, :C] * scale).reshape(B, T, C)          # scale folded in once
    k = qkv[:, C:C + kv_dim].reshape(B, T, kv_dim)
    v = qkv[:, C + kv_dim:].reshape(B, T, kv_dim)

    # ---- pack all heads into one batched dim: (heads*B, T, head_dim) ----
    # head h reads KV group h // h2g (static, so this is just lane slicing + concat)
    q_bh = jnp.concatenate(
        [q[:, :, h * head_dim:(h + 1) * head_dim] for h in range(heads)], axis=0)
    k_bh = jnp.concatenate(
        [k[:, :, (h // h2g) * head_dim:(h // h2g + 1) * head_dim] for h in range(heads)],
        axis=0)
    v_bh = jnp.concatenate(
        [v[:, :, (h // h2g) * head_dim:(h // h2g + 1) * head_dim] for h in range(heads)],
        axis=0)

    # ---- single batched QK^T over all heads & batch elements ----
    s = jnp.einsum('bqd,bkd->bqk', q_bh, k_bh,
                   preferred_element_type=jnp.float32)              # (H*B, T, T)

    row = lax.broadcasted_iota(jnp.int32, (T, T), 0)
    col = lax.broadcasted_iota(jnp.int32, (T, T), 1)
    s = jnp.where(row >= col, s, NEG_FILL)                          # causal mask

    # numerically stable softmax; reciprocal goes to the EUP slot
    m = jnp.max(s, axis=-1, keepdims=True)
    p = jnp.exp(s - m)
    l = jnp.sum(p, axis=-1, keepdims=True)
    attn = p * pl.reciprocal(l, approx=True)

    # ---- single batched attn @ V ----
    o = jnp.einsum('bqk,bkd->bqd', attn, v_bh,
                   preferred_element_type=jnp.float32)              # (H*B, T, hd)

    # reassemble the (B, T, C) head-interleaved layout; ONE lane-dense store.
    out = jnp.concatenate([o[h * B:(h + 1) * B] for h in range(heads)], axis=-1)
    o_ref[...] = out.astype(o_ref.dtype)


def gqa_forward(x, wq, wk, wv):
    B, T, C = x.shape
    # Fuse the three projection weights once, outside the kernel.
    w_fused = jnp.concatenate([wq, wk, wv], axis=1)                 # (C, C + 2*kv_dim)
    # TODO(synk): at production sizes (T>=2k, C>=4k) cast x / w_fused to bf16 for the
    # v6e/v7x MXU fast path, tile over T with an online-softmax, and size K/V tiles
    # against v7x's 64 MiB VMEM. At this toy size everything fits whole-array in VMEM.
    return pl.pallas_call(
        gqa_kernel,
        out_shape=jax.ShapeDtypeStruct((B, T, C), x.dtype),
        in_specs=[
            pl.BlockSpec(memory_space=pltpu.MemorySpace.VMEM),      # x, full array
            pl.BlockSpec(memory_space=pltpu.MemorySpace.VMEM),      # fused weights
        ],
        out_specs=pl.BlockSpec(memory_space=pltpu.MemorySpace.VMEM),
    )(x, w_fused)


def gqa_reference(x, wq, wk, wv):
    """Pure-JAX mirror of the PyTorch forward for verification."""
    B, T, C = x.shape
    q = (x @ wq).reshape(B, T, heads, head_dim).transpose(0, 2, 1, 3)    # (B,H,T,hd)
    k = (x @ wk).reshape(B, T, groups, head_dim).transpose(0, 2, 1, 3)   # (B,G,T,hd)
    v = (x @ wv).reshape(B, T, groups, head_dim).transpose(0, 2, 1, 3)
    kk = jnp.repeat(k, h2g, axis=1)
    vv = jnp.repeat(v, h2g, axis=1)
    s = jnp.einsum('bhqd,bhkd->bhqk', q, kk) * head_dim ** (-0.5)
    mask = jnp.tril(jnp.ones((T, T)))
    s = jnp.where(mask == 0, -jnp.inf, s)
    w = jax.nn.softmax(s, axis=-1)
    o = jnp.einsum('bhqk,bhkd->bhqd', w, vv)
    return o.transpose(0, 2, 1, 3).reshape(B, T, C)


if __name__ == "__main__":
    key = jax.random.PRNGKey(0)
    kx, kq, kk_, kv_ = jax.random.split(key, 4)

    B, T, C = 2, block_length, d_model
    x  = jax.random.normal(kx, (B, T, C), dtype=jnp.float32)
    # deterministic synthetic weights (nn.Linear(d_model, out, bias=False) -> [in, out] here)
    wq = jax.random.normal(kq,  (C, C),      dtype=jnp.float32) * 0.1
    wk = jax.random.normal(kk_, (C, kv_dim), dtype=jnp.float32) * 0.1
    wv = jax.random.normal(kv_, (C, kv_dim), dtype=jnp.float32) * 0.1

    out = gqa_forward(x, wq, wk, wv)
    jax.block_until_ready(out)

    ref = gqa_reference(x, wq, wk, wv)
    assert out.shape == (B, T, C)
    # tolerance loosened slightly vs exact math because the softmax denominator uses
    # the hardware approximate reciprocal (pl.reciprocal(approx=True)); structural
    # errors (wrong head/group mapping, mask, layout) would be O(0.1-1), far above this.
    assert jnp.allclose(out, ref, atol=1e-2, rtol=1e-2), "mismatch vs reference"

    print("KERNEL_OK")
</pallas_src>

<mosaic_0001>
module attributes {stable_mosaic.version = 11 : i64} {
  func.func @gqa_kernel(%arg0: memref<2x8x32xf32, #tpu.memory_space<vmem>>, %arg1: memref<32x64xf32, #tpu.memory_space<vmem>>, %arg2: memref<2x8x32xf32, #tpu.memory_space<vmem>>) attributes {dimension_semantics = [], scalar_prefetch = 0 : i64, scratch_operands = 0 : i64, tpu.core_type = #tpu.core_type<tc>} {
    %c0 = arith.constant 0 : index
    %c0_0 = arith.constant 0 : index
    %c0_1 = arith.constant 0 : index
    %0 = vector.load %arg0[%c0, %c0_0, %c0_1] : memref<2x8x32xf32, #tpu.memory_space<vmem>>, vector<2x8x32xf32>
    %1 = vector.shape_cast %0 : vector<2x8x32xf32> to vector<16x32xf32>
    %c0_2 = arith.constant 0 : index
    %c0_3 = arith.constant 0 : index
    %2 = vector.load %arg1[%c0_2, %c0_3] : memref<32x64xf32, #tpu.memory_space<vmem>>, vector<32x64xf32>
    %cst = arith.constant dense<0.000000e+00> : vector<16x64xf32>
    %3 = tpu.matmul %1, %2, %cst {dimension_numbers = #tpu.dot_dimension_numbers<[1], [0], [0], [1], [0, 0, 1, 1], [], []>} : vector<16x32xf32>, vector<32x64xf32>, vector<16x64xf32> -> vector<16x64xf32>
    %4 = vector.extract_strided_slice %3 {offsets = [0, 0], sizes = [16, 32], strides = [1, 1]} : vector<16x64xf32> to vector<16x32xf32>
    %cst_4 = arith.constant 0.353553385 : f32
    %5 = vector.broadcast %cst_4 : f32 to vector<16x32xf32>
    %6 = arith.mulf %4, %5 : vector<16x32xf32>
    %7 = vector.shape_cast %6 : vector<16x32xf32> to vector<2x8x32xf32>
    %8 = vector.extract_strided_slice %3 {offsets = [0, 32], sizes = [16, 16], strides = [1, 1]} : vector<16x64xf32> to vector<16x16xf32>
    %9 = vector.shape_cast %8 : vector<16x16xf32> to vector<2x8x16xf32>
    %10 = vector.extract_strided_slice %3 {offsets = [0, 48], sizes = [16, 16], strides = [1, 1]} : vector<16x64xf32> to vector<16x16xf32>
    %11 = vector.shape_cast %10 : vector<16x16xf32> to vector<2x8x16xf32>
    %12 = vector.extract_strided_slice %7 {offsets = [0, 0, 0], sizes = [2, 8, 8], strides = [1, 1, 1]} : vector<2x8x32xf32> to vector<2x8x8xf32>
    %13 = vector.extract_strided_slice %7 {offsets = [0, 0, 8], sizes = [2, 8, 8], strides = [1, 1, 1]} : vector<2x8x32xf32> to vector<2x8x8xf32>
    %14 = vector.extract_strided_slice %7 {offsets = [0, 0, 16], sizes = [2, 8, 8], strides = [1, 1, 1]} : vector<2x8x32xf32> to vector<2x8x8xf32>
    %15 = vector.extract_strided_slice %7 {offsets = [0, 0, 24], sizes = [2, 8, 8], strides = [1, 1, 1]} : vector<2x8x32xf32> to vector<2x8x8xf32>
    %16 = tpu.concatenate %12, %13, %14, %15 in 0 : vector<2x8x8xf32>, vector<2x8x8xf32>, vector<2x8x8xf32>, vector<2x8x8xf32> -> vector<8x8x8xf32>
    %17 = vector.extract_strided_slice %9 {offsets = [0, 0, 0], sizes = [2, 8, 8], strides = [1, 1, 1]} : vector<2x8x16xf32> to vector<2x8x8xf32>
    %18 = vector.extract_strided_slice %9 {offsets = [0, 0, 0], sizes = [2, 8, 8], strides = [1, 1, 1]} : vector<2x8x16xf32> to vector<2x8x8xf32>
    %19 = vector.extract_strided_slice %9 {offsets = [0, 0, 8], sizes = [2, 8, 8], strides = [1, 1, 1]} : vector<2x8x16xf32> to vector<2x8x8xf32>
    %20 = vector.extract_strided_slice %9 {offsets = [0, 0, 8], sizes = [2, 8, 8], strides = [1, 1, 1]} : vector<2x8x16xf32> to vector<2x8x8xf32>
    %21 = tpu.concatenate %17, %18, %19, %20 in 0 : vector<2x8x8xf32>, vector<2x8x8xf32>, vector<2x8x8xf32>, vector<2x8x8xf32> -> vector<8x8x8xf32>
    %22 = vector.extract_strided_slice %11 {offsets = [0, 0, 0], sizes = [2, 8, 8], strides = [1, 1, 1]} : vector<2x8x16xf32> to vector<2x8x8xf32>
    %23 = vector.extract_strided_slice %11 {offsets = [0, 0, 0], sizes = [2, 8, 8], strides = [1, 1, 1]} : vector<2x8x16xf32> to vector<2x8x8xf32>
    %24 = vector.extract_strided_slice %11 {offsets = [0, 0, 8], sizes = [2, 8, 8], strides = [1, 1, 1]} : vector<2x8x16xf32> to vector<2x8x8xf32>
    %25 = vector.extract_strided_slice %11 {offsets = [0, 0, 8], sizes = [2, 8, 8], strides = [1, 1, 1]} : vector<2x8x16xf32> to vector<2x8x8xf32>
    %26 = tpu.concatenate %22, %23, %24, %25 in 0 : vector<2x8x8xf32>, vector<2x8x8xf32>, vector<2x8x8xf32>, vector<2x8x8xf32> -> vector<8x8x8xf32>
    "tpu.trace_start"() <{level = 10 : i32, message = "bqd,bkd->bqk"}> : () -> ()
    %cst_5 = arith.constant dense<0.000000e+00> : vector<8x8x8xf32>
    %27 = tpu.matmul %16, %21, %cst_5 {dimension_numbers = #tpu.dot_dimension_numbers<[2], [2], [1], [1], [0, 0, 0, 1, 1, 1], [0], [0]>} : vector<8x8x8xf32>, vector<8x8x8xf32>, vector<8x8x8xf32> -> vector<8x8x8xf32>
    "tpu.trace_stop"() : () -> ()
    %28 = tpu.iota {dimensions = array<i32: 0>} : vector<8x8xi32>
    %29 = tpu.iota {dimensions = array<i32: 1>} : vector<8x8xi32>
    %30 = arith.cmpi sge, %28, %29 : vector<8x8xi32>
    %cst_6 = arith.constant -3.40282347E+38 : f32
    %31 = vector.shape_cast %30 : vector<8x8xi1> to vector<1x8x8xi1>
    %32 = vector.broadcast %31 : vector<1x8x8xi1> to vector<8x8x8xi1>
    %33 = vector.broadcast %cst_6 : f32 to vector<8x8x8xf32>
    %34 = arith.select %32, %27, %33 : vector<8x8x8xi1>, vector<8x8x8xf32>
    %cst_7 = arith.constant dense<0xFF800000> : vector<8x8xf32>
    %35 = vector.multi_reduction <maximumf>, %34, %cst_7 [2] : vector<8x8x8xf32> to vector<8x8xf32>
    %36 = vector.shape_cast %35 : vector<8x8xf32> to vector<8x8x1xf32>
    %37 = vector.broadcast %36 : vector<8x8x1xf32> to vector<8x8x8xf32>
    %38 = arith.subf %34, %37 : vector<8x8x8xf32>
    %39 = math.exp %38 : vector<8x8x8xf32>
    %cst_8 = arith.constant dense<0.000000e+00> : vector<8x8xf32>
    %40 = vector.multi_reduction <add>, %39, %cst_8 [2] : vector<8x8x8xf32> to vector<8x8xf32>
    %41 = vector.shape_cast %40 : vector<8x8xf32> to vector<8x8x1xf32>
    %42 = tpu.reciprocal %41 {approx = true} : vector<8x8x1xf32> -> vector<8x8x1xf32>
    %43 = vector.broadcast %42 : vector<8x8x1xf32> to vector<8x8x8xf32>
    %44 = arith.mulf %39, %43 : vector<8x8x8xf32>
    "tpu.trace_start"() <{level = 10 : i32, message = "bqk,bkd->bqd"}> : () -> ()
    %cst_9 = arith.constant dense<0.000000e+00> : vector<8x8x8xf32>
    %45 = tpu.matmul %44, %26, %cst_9 {dimension_numbers = #tpu.dot_dimension_numbers<[2], [1], [1], [2], [0, 0, 0, 1, 1, 2], [0], [0]>} : vector<8x8x8xf32>, vector<8x8x8xf32>, vector<8x8x8xf32> -> vector<8x8x8xf32>
    "tpu.trace_stop"() : () -> ()
    %46 = vector.extract_strided_slice %45 {offsets = [0, 0, 0], sizes = [2, 8, 8], strides = [1, 1, 1]} : vector<8x8x8xf32> to vector<2x8x8xf32>
    %47 = vector.extract_strided_slice %45 {offsets = [2, 0, 0], sizes = [2, 8, 8], strides = [1, 1, 1]} : vector<8x8x8xf32> to vector<2x8x8xf32>
    %48 = vector.extract_strided_slice %45 {offsets = [4, 0, 0], sizes = [2, 8, 8], strides = [1, 1, 1]} : vector<8x8x8xf32> to vector<2x8x8xf32>
    %49 = vector.extract_strided_slice %45 {offsets = [6, 0, 0], sizes = [2, 8, 8], strides = [1, 1, 1]} : vector<8x8x8xf32> to vector<2x8x8xf32>
    %50 = tpu.concatenate %46, %47, %48, %49 in 2 : vector<2x8x8xf32>, vector<2x8x8xf32>, vector<2x8x8xf32>, vector<2x8x8xf32> -> vector<2x8x32xf32>
    %c0_10 = arith.constant 0 : index
    %c0_11 = arith.constant 0 : index
    %c0_12 = arith.constant 0 : index
    %51 = vector.load %arg2[%c0_10, %c0_11, %c0_12] : memref<2x8x32xf32, #tpu.memory_space<vmem>>, vector<2x8x32xf32>
    tpu.vector_store %arg2[%c0_10, %c0_11, %c0_12], %50 {strides = array<i32>} : memref<2x8x32xf32, #tpu.memory_space<vmem>>, vector<2x8x32xf32>,
    return
  }
}

</mosaic_0001>

<llo_original>
// kernel: tpu_custom_call.1
$region0: #{tpu_custom_call.1}
  #allocation0 [shape = 'u32[]', space=smem, size = 0x4, offset = 0x4, fixed_abs, tag = 'smem constant byte address 0x4 - core index']
  #allocation1 [shape = 'u32[144,128]{1,0:T(1,128)}', space=vmem, size = 0x12000, scoped, tag = 'internal scratch']
  %s0 = inlined_call_operand.hbm [shape: f32[2,8,32], index: 0, kind: input, shape index: {}]
  %s1 = inlined_call_operand.hbm [shape: f32[32,64], index: 1, kind: input, shape index: {}]
  %s2 = inlined_call_operand.hbm [shape: f32[2,8,32], index: 2, kind: output, shape index: {}]
  %s3 = sld [smem:[#allocation0]]
  $region26: #{tpu_custom_call.1} parent=0
    _
  %s5 = ssub.s32 1, %s3
  %s6 = scalar_select 0, %s5, %s3
  $region1: #{tpu_custom_call.1} parent=0
    #allocation2 [shape = 'u8[8192]{0}', space=vmem, size = 0x2000, scoped, tag = 'input window, operand 0, single buffered']
    #allocation3 [shape = 's32[1]{0}', space=sflag, size = 0x4, scoped, tag = 'scoped memory for tpu_custom_call.1']
    #allocation4 [shape = 's32[1]{0}', space=sflag, size = 0x4, scoped, tag = 'scoped memory for tpu_custom_call.1']
    #allocation5 [shape = 'u8[16384]{0}', space=vmem, size = 0x4000, scoped, tag = 'input window, operand 1, single buffered']
    #allocation6 [shape = 's32[1]{0}', space=sflag, size = 0x4, scoped, tag = 'scoped memory for tpu_custom_call.1']
    #allocation7 [shape = 'u8[8192]{0}', space=vmem, size = 0x2000, scoped, tag = 'output window, operand 0, single buffered']
    %7 = vsyncpa [#allocation3], 0
    %8 = vsyncpa [#allocation6], 0
    %9 = vsyncpa [#allocation4], 0
    // Predicated region
    $region2: #{tpu_custom_call.1} parent=1 // pred_check
      _
    $region3: #{tpu_custom_call.1} parent=1 // pred_check_branch
      %11 = sbr.rel (0) target = $region5
    $region4: #{tpu_custom_call.1} parent=1 // pred_region
      %s13 = ssub.s32 256, 256
      %14 = vsyncadd [#allocation3], %s13
      %s15 = sshll.u32 [#allocation2], 4
      %s16 = int_to_ptr.vmem [resolvable:$true] %s15
      %21 = dma.hbm_to_vmem [thread:$0]  %s0, 256, %s16, [#allocation3], 128, 128, 8
    $region5: #{tpu_custom_call.1} parent=1 // pred_fallthru
      _
    // Predicated region
    $region6: #{tpu_custom_call.1} parent=1 // pred_check
      _
    $region7: #{tpu_custom_call.1} parent=1 // pred_check_branch
      %23 = sbr.rel (0) target = $region9
    $region8: #{tpu_custom_call.1} parent=1 // pred_region
      %s25 = ssub.s32 512, 512
      %26 = vsyncadd [#allocation6], %s25
      %s27 = sshll.u32 [#allocation5], 4
      %s28 = int_to_ptr.vmem [resolvable:$true] %s27
      %33 = dma.hbm_to_vmem [thread:$0]  %s1, 512, %s28, [#allocation6], 128, 128, 8
    $region9: #{tpu_custom_call.1} parent=1 // pred_fallthru
      _
    // Predicated region
    $region10: #{tpu_custom_call.1} parent=1 // pred_check
      _
    $region11: #{tpu_custom_call.1} parent=1 // pred_check_branch
      %35 = sbr.rel (0) target = $region13
    $region12: #{tpu_custom_call.1} parent=1 // pred_region
      %36 = dma.done [#allocation3], 256
    $region13: #{tpu_custom_call.1} parent=1 // pred_fallthru
      _
    // Predicated region
    $region14: #{tpu_custom_call.1} parent=1 // pred_check
      _
    $region15: #{tpu_custom_call.1} parent=1 // pred_check_branch
      %38 = sbr.rel (0) target = $region17
    $region16: #{tpu_custom_call.1} parent=1 // pred_region
      %39 = dma.done [#allocation6], 512
    $region17: #{tpu_custom_call.1} parent=1 // pred_fallthru
      _
    %v40 = vld [vmem:[#allocation2] sm:$0xff]
    %v41 = vld [vmem:[#allocation2 + $0x8] sm:$0xff]
    %v42 = vld [vmem:[#allocation5] sm:$0xff]
    %v43 = vld [vmem:[#allocation5 + $0x8] sm:$0xff]
    %v44 = vld [vmem:[#allocation5 + $0x10] sm:$0xff]
    %v45 = vld [vmem:[#allocation5 + $0x18] sm:$0xff]
    %vm46 = vcmask 261120
    %v48 = vsel %vm46, %v40, 0
    %v51 = vsel %vm46, %v41, 0
    %53 = vmatprep.subr.mxu0 0.0
    %54 = vmatpush1.msra.mxu0 %v42
    %55 = vmatprep.subr.mxu0 0.0
    %56 = vmatpush1.msra.mxu0 %v43
    %57 = vmatprep.subr.mxu0 0.0
    %58 = vmatpush1.msra.mxu0 %v44
    %59 = vmatprep.subr.mxu0 0.0
    %60 = vmatpush1.msra.mxu0 %v45
    %61 = vmatprep.subr.mxu0 0.0
    %62 = vmatpush1.msra.mxu0 0.0
    %63 = vmatprep.subr.mxu0 0.0
    %64 = vmatpush1.msra.mxu0 0.0
    %65 = vmatprep.subr.mxu0 0.0
    %66 = vmatpush1.msra.mxu0 0.0
    %67 = vmatprep.subr.mxu0 0.0
    %68 = vmatpush1.msra.mxu0 0.0
    %69 = vmatprep.subr.mxu0 0.0
    %70 = vmatpush1.msra.mxu0 0.0
    %71 = vmatprep.subr.mxu0 0.0
    %72 = vmatpush1.msra.mxu0 0.0
    %73 = vmatprep.subr.mxu0 0.0
    %74 = vmatpush1.msra.mxu0 0.0
    %75 = vmatprep.subr.mxu0 0.0
    %76 = vmatpush1.msra.mxu0 0.0
    %77 = vmatprep.subr.mxu0 0.0
    %78 = vmatpush1.msra.mxu0 0.0
    %79 = vmatprep.subr.mxu0 0.0
    %80 = vmatpush1.msra.mxu0 0.0
    %81 = vmatprep.subr.mxu0 0.0
    %82 = vmatpush1.msra.mxu0 0.0
    %83 = vmatprep.subr.mxu0 0.0
    %84 = vmatpush1.msra.mxu0 0.0
    %85 = vmatprep.subr.mxu0 0.0
    %86 = vmatpush1.msra.mxu0 0.0
    %87 = vmatprep.subr.mxu0 0.0
    %88 = vmatpush1.msra.mxu0 0.0
    %89 = vmatprep.subr.mxu0 0.0
    %90 = vmatpush1.msra.mxu0 0.0
    %91 = vmatprep.subr.mxu0 0.0
    %92 = vmatpush1.msra.mxu0 0.0
    %93 = vmatprep.subr.mxu0 0.0
    %94 = vmatpush1.msra.mxu0 0.0
    %95 = vmatprep.subr.mxu0 0.0
    %96 = vmatpush1.msra.mxu0 0.0
    %97 = vmatprep.subr.mxu0 0.0
    %98 = vmatpush1.msra.mxu0 0.0
    %99 = vmatprep.subr.mxu0 0.0
    %100 = vmatpush1.msra.mxu0 0.0
    %101 = vmatprep.subr.mxu0 0.0
    %102 = vmatpush1.msra.mxu0 0.0
    %103 = vmatprep.subr.mxu0 0.0
    %104 = vmatpush1.msra.mxu0 0.0
    %105 = vmatprep.subr.mxu0 0.0
    %106 = vmatpush1.msra.mxu0 0.0
    %107 = vmatprep.subr.mxu0 0.0
    %108 = vmatpush1.msra.mxu0 0.0
    %109 = vmatprep.subr.mxu0 0.0
    %110 = vmatpush1.msra.mxu0 0.0
    %111 = vmatprep.subr.mxu0 0.0
    %112 = vmatpush1.msra.mxu0 0.0
    %113 = vmatprep.subr.mxu0 0.0
    %114 = vmatpush1.msra.mxu0 0.0
    %115 = vmatprep.subr.mxu0 0.0
    %116 = vmatpush1.msra.mxu0 0.0
    %117 = vmatprep.mubr.f32.mxu0 0.0
    %118 = vmatmul.mubr.f32.gmra.mrb[0].mxu0 %v48
    %v119 = vpop.f32.mrb[0].mxu0
    %v120 = vadd.f32 0.0, %v119
    %v121 = vpop.f32.mrb[0].mxu0
    %122 = vmatprep.mubr.f32.mxu0 0.0
    %123 = vmatmul.mubr.f32.gmra.mrb[0].mxu0 %v51
    %v124 = vpop.f32.mrb[0].mxu0
    %v125 = vadd.f32 0.0, %v124
    %v126 = vpop.f32.mrb[0].mxu0
    %127 = vdwg.mxu0
    %v128 = vmul.f32 %v120, 0.35355338
    %v129 = vmul.f32 %v125, 0.35355338
    %132 = vrot.lane.b32.xlu0 %v128, 120
    %v133 = vpop.permute.xlu0 %132
    %134 = vrot.lane.b32.xlu0 %v129, 120
    %v135 = vpop.permute.xlu0 %134
    %136 = vrot.lane.b32.xlu0 %v128, 112
    %v137 = vpop.permute.xlu0 %136
    %138 = vrot.lane.b32.xlu0 %v129, 112
    %v139 = vpop.permute.xlu0 %138
    %140 = vrot.lane.b32.xlu0 %v128, 104
    %v141 = vpop.permute.xlu0 %140
    %142 = vrot.lane.b32.xlu0 %v129, 104
    %v143 = vpop.permute.xlu0 %142
    %146 = vrot.lane.b32.xlu0 %v120, 120
    %v147 = vpop.permute.xlu0 %146
    %148 = vrot.lane.b32.xlu0 %v125, 120
    %v149 = vpop.permute.xlu0 %148
    %150 = vrot.lane.b32.xlu0 %v120, 96
    %v151 = vpop.permute.xlu0 %150
    %vm152 = vcmask 64512
    %v153 = vsel %vm152, %v128, 0
    %v155 = vsel %vm152, %v151, 0
    %157 = vmatprep.subr.mxu0 0.0
    %158 = vmatpush1.xpose.msra.mxu0 %v155
    %159 = vmatprep.subr.mxu0 0.0
    %160 = vmatpush1.xpose.msra.mxu0 0.0
    %161 = vmatprep.subr.mxu0 0.0
    %162 = vmatpush1.xpose.msra.mxu0 0.0
    %163 = vmatprep.subr.mxu0 0.0
    %164 = vmatpush1.xpose.msra.mxu0 0.0
    %165 = vmatprep.subr.mxu0 0.0
    %166 = vmatpush1.xpose.msra.mxu0 0.0
    %167 = vmatprep.subr.mxu0 0.0
    %168 = vmatpush1.xpose.msra.mxu0 0.0
    %169 = vmatprep.subr.mxu0 0.0
    %170 = vmatpush1.xpose.msra.mxu0 0.0
    %171 = vmatprep.subr.mxu0 0.0
    %172 = vmatpush1.xpose.msra.mxu0 0.0
    %173 = vmatprep.subr.mxu0 0.0
    %174 = vmatpush1.xpose.msra.mxu0 0.0
    %175 = vmatprep.subr.mxu0 0.0
    %176 = vmatpush1.xpose.msra.mxu0 0.0
    %177 = vmatprep.subr.mxu0 0.0
    %178 = vmatpush1.xpose.msra.mxu0 0.0
    %179 = vmatprep.subr.mxu0 0.0
    %180 = vmatpush1.xpose.msra.mxu0 0.0
    %181 = vmatprep.subr.mxu0 0.0
    %182 = vmatpush1.xpose.msra.mxu0 0.0
    %183 = vmatprep.subr.mxu0 0.0
    %184 = vmatpush1.xpose.msra.mxu0 0.0
    %185 = vmatprep.subr.mxu0 0.0
    %186 = vmatpush1.xpose.msra.mxu0 0.0
    %187 = vmatprep.subr.mxu0 0.0
    %188 = vmatpush1.xpose.msra.mxu0 0.0
    %189 = vmatprep.subr.mxu0 0.0
    %190 = vmatpush1.xpose.msra.mxu0 0.0
    %191 = vmatprep.subr.mxu0 0.0
    %192 = vmatpush1.xpose.msra.mxu0 0.0
    %193 = vmatprep.subr.mxu0 0.0
    %194 = vmatpush1.xpose.msra.mxu0 0.0
    %195 = vmatprep.subr.mxu0 0.0
    %196 = vmatpush1.xpose.msra.mxu0 0.0
    %197 = vmatprep.subr.mxu0 0.0
    %198 = vmatpush1.xpose.msra.mxu0 0.0
    %199 = vmatprep.subr.mxu0 0.0
    %200 = vmatpush1.xpose.msra.mxu0 0.0
    %201 = vmatprep.subr.mxu0 0.0
    %202 = vmatpush1.xpose.msra.mxu0 0.0
    %203 = vmatprep.subr.mxu0 0.0
    %204 = vmatpush1.xpose.msra.mxu0 0.0
    %205 = vmatprep.subr.mxu0 0.0
    %206 = vmatpush1.xpose.msra.mxu0 0.0
    %207 = vmatprep.subr.mxu0 0.0
    %208 = vmatpush1.xpose.msra.mxu0 0.0
    %209 = vmatprep.subr.mxu0 0.0
    %210 = vmatpush1.xpose.msra.mxu0 0.0
    %211 = vmatprep.subr.mxu0 0.0
    %212 = vmatpush1.xpose.msra.mxu0 0.0
    %213 = vmatprep.subr.mxu0 0.0
    %214 = vmatpush1.xpose.msra.mxu0 0.0
    %215 = vmatprep.subr.mxu0 0.0
    %216 = vmatpush1.xpose.msra.mxu0 0.0
    %217 = vmatprep.subr.mxu0 0.0
    %218 = vmatpush1.xpose.msra.mxu0 0.0
    %219 = vmatprep.subr.mxu0 0.0
    %220 = vmatpush1.xpose.msra.mxu0 0.0
    %221 = vmatprep.mubr.f32.mxu0 0.0
    %222 = vmatmul.mubr.f32.gmra.mrb[0].mxu0 %v153
    %v223 = vpop.f32.mrb[0].mxu0
    %v224 = vadd.f32 0.0, %v223
    %v225 = vpop.f32.mrb[0].mxu0
    %226 = vdwg.mxu0
    %227 = vrot.lane.b32.xlu0 %v125, 96
    %v228 = vpop.permute.xlu0 %227
    %v229 = vsel %vm152, %v129, 0
    %v231 = vsel %vm152, %v228, 0
    %233 = vmatprep.subr.mxu0 0.0
    %234 = vmatpush1.xpose.msra.mxu0 %v231
    %235 = vmatprep.subr.mxu0 0.0
    %236 = vmatpush1.xpose.msra.mxu0 0.0
    %237 = vmatprep.subr.mxu0 0.0
    %238 = vmatpush1.xpose.msra.mxu0 0.0
    %239 = vmatprep.subr.mxu0 0.0
    %240 = vmatpush1.xpose.msra.mxu0 0.0
    %241 = vmatprep.subr.mxu0 0.0
    %242 = vmatpush1.xpose.msra.mxu0 0.0
    %243 = vmatprep.subr.mxu0 0.0
    %244 = vmatpush1.xpose.msra.mxu0 0.0
    %245 = vmatprep.subr.mxu0 0.0
    %246 = vmatpush1.xpose.msra.mxu0 0.0
    %247 = vmatprep.subr.mxu0 0.0
    %248 = vmatpush1.xpose.msra.mxu0 0.0
    %249 = vmatprep.subr.mxu0 0.0
    %250 = vmatpush1.xpose.msra.mxu0 0.0
    %251 = vmatprep.subr.mxu0 0.0
    %252 = vmatpush1.xpose.msra.mxu0 0.0
    %253 = vmatprep.subr.mxu0 0.0
    %254 = vmatpush1.xpose.msra.mxu0 0.0
    %255 = vmatprep.subr.mxu0 0.0
    %256 = vmatpush1.xpose.msra.mxu0 0.0
    %257 = vmatprep.subr.mxu0 0.0
    %258 = vmatpush1.xpose.msra.mxu0 0.0
    %259 = vmatprep.subr.mxu0 0.0
    %260 = vmatpush1.xpose.msra.mxu0 0.0
    %261 = vmatprep.subr.mxu0 0.0
    %262 = vmatpush1.xpose.msra.mxu0 0.0
    %263 = vmatprep.subr.mxu0 0.0
    %264 = vmatpush1.xpose.msra.mxu0 0.0
    %265 = vmatprep.subr.mxu0 0.0
    %266 = vmatpush1.xpose.msra.mxu0 0.0
    %267 = vmatprep.subr.mxu0 0.0
    %268 = vmatpush1.xpose.msra.mxu0 0.0
    %269 = vmatprep.subr.mxu0 0.0
    %270 = vmatpush1.xpose.msra.mxu0 0.0
    %271 = vmatprep.subr.mxu0 0.0
    %272 = vmatpush1.xpose.msra.mxu0 0.0
    %273 = vmatprep.subr.mxu0 0.0
    %274 = vmatpush1.xpose.msra.mxu0 0.0
    %275 = vmatprep.subr.mxu0 0.0
    %276 = vmatpush1.xpose.msra.mxu0 0.0
    %277 = vmatprep.subr.mxu0 0.0
    %278 = vmatpush1.xpose.msra.mxu0 0.0
    %279 = vmatprep.subr.mxu0 0.0
    %280 = vmatpush1.xpose.msra.mxu0 0.0
    %281 = vmatprep.subr.mxu0 0.0
    %282 = vmatpush1.xpose.msra.mxu0 0.0
    %283 = vmatprep.subr.mxu0 0.0
    %284 = vmatpush1.xpose.msra.mxu0 0.0
    %285 = vmatprep.subr.mxu0 0.0
    %286 = vmatpush1.xpose.msra.mxu0 0.0
    %287 = vmatprep.subr.mxu0 0.0
    %288 = vmatpush1.xpose.msra.mxu0 0.0
    %289 = vmatprep.subr.mxu0 0.0
    %290 = vmatpush1.xpose.msra.mxu0 0.0
    %291 = vmatprep.subr.mxu0 0.0
    %292 = vmatpush1.xpose.msra.mxu0 0.0
    %293 = vmatprep.subr.mxu0 0.0
    %294 = vmatpush1.xpose.msra.mxu0 0.0
    %295 = vmatprep.subr.mxu0 0.0
    %296 = vmatpush1.xpose.msra.mxu0 0.0
    %297 = vmatprep.mubr.f32.mxu0 0.0
    %298 = vmatmul.mubr.f32.gmra.mrb[0].mxu0 %v229
    %v299 = vpop.f32.mrb[0].mxu0
    %v300 = vadd.f32 0.0, %v299
    %v301 = vpop.f32.mrb[0].mxu0
    %302 = vdwg.mxu0
    %v303 = vsel %vm152, %v133, 0
    %305 = vmatprep.subr.mxu0 0.0
    %306 = vmatpush1.xpose.msra.mxu0 %v155
    %307 = vmatprep.subr.mxu0 0.0
    %308 = vmatpush1.xpose.msra.mxu0 0.0
    %309 = vmatprep.subr.mxu0 0.0
    %310 = vmatpush1.xpose.msra.mxu0 0.0
    %311 = vmatprep.subr.mxu0 0.0
    %312 = vmatpush1.xpose.msra.mxu0 0.0
    %313 = vmatprep.subr.mxu0 0.0
    %314 = vmatpush1.xpose.msra.mxu0 0.0
    %315 = vmatprep.subr.mxu0 0.0
    %316 = vmatpush1.xpose.msra.mxu0 0.0
    %317 = vmatprep.subr.mxu0 0.0
    %318 = vmatpush1.xpose.msra.mxu0 0.0
    %319 = vmatprep.subr.mxu0 0.0
    %320 = vmatpush1.xpose.msra.mxu0 0.0
    %321 = vmatprep.subr.mxu0 0.0
    %322 = vmatpush1.xpose.msra.mxu0 0.0
    %323 = vmatprep.subr.mxu0 0.0
    %324 = vmatpush1.xpose.msra.mxu0 0.0
    %325 = vmatprep.subr.mxu0 0.0
    %326 = vmatpush1.xpose.msra.mxu0 0.0
    %327 = vmatprep.subr.mxu0 0.0
    %328 = vmatpush1.xpose.msra.mxu0 0.0
    %329 = vmatprep.subr.mxu0 0.0
    %330 = vmatpush1.xpose.msra.mxu0 0.0
    %331 = vmatprep.subr.mxu0 0.0
    %332 = vmatpush1.xpose.msra.mxu0 0.0
    %333 = vmatprep.subr.mxu0 0.0
    %334 = vmatpush1.xpose.msra.mxu0 0.0
    %335 = vmatprep.subr.mxu0 0.0
    %336 = vmatpush1.xpose.msra.mxu0 0.0
    %337 = vmatprep.subr.mxu0 0.0
    %338 = vmatpush1.xpose.msra.mxu0 0.0
    %339 = vmatprep.subr.mxu0 0.0
    %340 = vmatpush1.xpose.msra.mxu0 0.0
    %341 = vmatprep.subr.mxu0 0.0
    %342 = vmatpush1.xpose.msra.mxu0 0.0
    %343 = vmatprep.subr.mxu0 0.0
    %344 = vmatpush1.xpose.msra.mxu0 0.0
    %345 = vmatprep.subr.mxu0 0.0
    %346 = vmatpush1.xpose.msra.mxu0 0.0
    %347 = vmatprep.subr.mxu0 0.0
    %348 = vmatpush1.xpose.msra.mxu0 0.0
    %349 = vmatprep.subr.mxu0 0.0
    %350 = vmatpush1.xpose.msra.mxu0 0.0
    %351 = vmatprep.subr.mxu0 0.0
    %352 = vmatpush1.xpose.msra.mxu0 0.0
    %353 = vmatprep.subr.mxu0 0.0
    %354 = vmatpush1.xpose.msra.mxu0 0.0
    %355 = vmatprep.subr.mxu0 0.0
    %356 = vmatpush1.xpose.msra.mxu0 0.0
    %357 = vmatprep.subr.mxu0 0.0
    %358 = vmatpush1.xpose.msra.mxu0 0.0
    %359 = vmatprep.subr.mxu0 0.0
    %360 = vmatpush1.xpose.msra.mxu0 0.0
    %361 = vmatprep.subr.mxu0 0.0
    %362 = vmatpush1.xpose.msra.mxu0 0.0
    %363 = vmatprep.subr.mxu0 0.0
    %364 = vmatpush1.xpose.msra.mxu0 0.0
    %365 = vmatprep.subr.mxu0 0.0
    %366 = vmatpush1.xpose.msra.mxu0 0.0
    %367 = vmatprep.subr.mxu0 0.0
    %368 = vmatpush1.xpose.msra.mxu0 0.0
    %369 = vmatprep.mubr.f32.mxu0 0.0
    %370 = vmatmul.mubr.f32.gmra.mrb[0].mxu0 %v303
    %v371 = vpop.f32.mrb[0].mxu0
    %v372 = vadd.f32 0.0, %v371
    %v373 = vpop.f32.mrb[0].mxu0
    %374 = vdwg.mxu0
    %v375 = vsel %vm152, %v135, 0
    %377 = vmatprep.subr.mxu0 0.0
    %378 = vmatpush1.xpose.msra.mxu0 %v231
    %379 = vmatprep.subr.mxu0 0.0
    %380 = vmatpush1.xpose.msra.mxu0 0.0
    %381 = vmatprep.subr.mxu0 0.0
    %382 = vmatpush1.xpose.msra.mxu0 0.0
    %383 = vmatprep.subr.mxu0 0.0
    %384 = vmatpush1.xpose.msra.mxu0 0.0
    %385 = vmatprep.subr.mxu0 0.0
    %386 = vmatpush1.xpose.msra.mxu0 0.0
    %387 = vmatprep.subr.mxu0 0.0
    %388 = vmatpush1.xpose.msra.mxu0 0.0
    %389 = vmatprep.subr.mxu0 0.0
    %390 = vmatpush1.xpose.msra.mxu0 0.0
    %391 = vmatprep.subr.mxu0 0.0
    %392 = vmatpush1.xpose.msra.mxu0 0.0
    %393 = vmatprep.subr.mxu0 0.0
    %394 = vmatpush1.xpose.msra.mxu0 0.0
    %395 = vmatprep.subr.mxu0 0.0
    %396 = vmatpush1.xpose.msra.mxu0 0.0
    %397 = vmatprep.subr.mxu0 0.0
    %398 = vmatpush1.xpose.msra.mxu0 0.0
    %399 = vmatprep.subr.mxu0 0.0
    %400 = vmatpush1.xpose.msra.mxu0 0.0
    %401 = vmatprep.subr.mxu0 0.0
    %402 = vmatpush1.xpose.msra.mxu0 0.0
    %403 = vmatprep.subr.mxu0 0.0
    %404 = vmatpush1.xpose.msra.mxu0 0.0
    %405 = vmatprep.subr.mxu0 0.0
    %406 = vmatpush1.xpose.msra.mxu0 0.0
    %407 = vmatprep.subr.mxu0 0.0
    %408 = vmatpush1.xpose.msra.mxu0 0.0
    %409 = vmatprep.subr.mxu0 0.0
    %410 = vmatpush1.xpose.msra.mxu0 0.0
    %411 = vmatprep.subr.mxu0 0.0
    %412 = vmatpush1.xpose.msra.mxu0 0.0
    %413 = vmatprep.subr.mxu0 0.0
    %414 = vmatpush1.xpose.msra.mxu0 0.0
    %415 = vmatprep.subr.mxu0 0.0
    %416 = vmatpush1.xpose.msra.mxu0 0.0
    %417 = vmatprep.subr.mxu0 0.0
    %418 = vmatpush1.xpose.msra.mxu0 0.0
    %419 = vmatprep.subr.mxu0 0.0
    %420 = vmatpush1.xpose.msra.mxu0 0.0
    %421 = vmatprep.subr.mxu0 0.0
    %422 = vmatpush1.xpose.msra.mxu0 0.0
    %423 = vmatprep.subr.mxu0 0.0
    %424 = vmatpush1.xpose.msra.mxu0 0.0
    %425 = vmatprep.subr.mxu0 0.0
    %426 = vmatpush1.xpose.msra.mxu0 0.0
    %427 = vmatprep.subr.mxu0 0.0
    %428 = vmatpush1.xpose.msra.mxu0 0.0
    %429 = vmatprep.subr.mxu0 0.0
    %430 = vmatpush1.xpose.msra.mxu0 0.0
    %431 = vmatprep.subr.mxu0 0.0
    %432 = vmatpush1.xpose.msra.mxu0 0.0
    %433 = vmatprep.subr.mxu0 0.0
    %434 = vmatpush1.xpose.msra.mxu0 0.0
    %435 = vmatprep.subr.mxu0 0.0
    %436 = vmatpush1.xpose.msra.mxu0 0.0
    %437 = vmatprep.subr.mxu0 0.0
    %438 = vmatpush1.xpose.msra.mxu0 0.0
    %439 = vmatprep.subr.mxu0 0.0
    %440 = vmatpush1.xpose.msra.mxu0 0.0
    %441 = vmatprep.mubr.f32.mxu0 0.0
    %442 = vmatmul.mubr.f32.gmra.mrb[0].mxu0 %v375
    %v443 = vpop.f32.mrb[0].mxu0
    %v444 = vadd.f32 0.0, %v443
    %v445 = vpop.f32.mrb[0].mxu0
    %446 = vdwg.mxu0
    %447 = vrot.lane.b32.xlu0 %v147, 96
    %v448 = vpop.permute.xlu0 %447
    %v449 = vsel %vm152, %v137, 0
    %v451 = vsel %vm152, %v448, 0
    %453 = vmatprep.subr.mxu0 0.0
    %454 = vmatpush1.xpose.msra.mxu0 %v451
    %455 = vmatprep.subr.mxu0 0.0
    %456 = vmatpush1.xpose.msra.mxu0 0.0
    %457 = vmatprep.subr.mxu0 0.0
    %458 = vmatpush1.xpose.msra.mxu0 0.0
    %459 = vmatprep.subr.mxu0 0.0
    %460 = vmatpush1.xpose.msra.mxu0 0.0
    %461 = vmatprep.subr.mxu0 0.0
    %462 = vmatpush1.xpose.msra.mxu0 0.0
    %463 = vmatprep.subr.mxu0 0.0
    %464 = vmatpush1.xpose.msra.mxu0 0.0
    %465 = vmatprep.subr.mxu0 0.0
    %466 = vmatpush1.xpose.msra.mxu0 0.0
    %467 = vmatprep.subr.mxu0 0.0
    %468 = vmatpush1.xpose.msra.mxu0 0.0
    %469 = vmatprep.subr.mxu0 0.0
    %470 = vmatpush1.xpose.msra.mxu0 0.0
    %471 = vmatprep.subr.mxu0 0.0
    %472 = vmatpush1.xpose.msra.mxu0 0.0
    %473 = vmatprep.subr.mxu0 0.0
    %474 = vmatpush1.xpose.msra.mxu0 0.0
    %475 = vmatprep.subr.mxu0 0.0
    %476 = vmatpush1.xpose.msra.mxu0 0.0
    %477 = vmatprep.subr.mxu0 0.0
    %478 = vmatpush1.xpose.msra.mxu0 0.0
    %479 = vmatprep.subr.mxu0 0.0
    %480 = vmatpush1.xpose.msra.mxu0 0.0
    %481 = vmatprep.subr.mxu0 0.0
    %482 = vmatpush1.xpose.msra.mxu0 0.0
    %483 = vmatprep.subr.mxu0 0.0
    %484 = vmatpush1.xpose.msra.mxu0 0.0
    %485 = vmatprep.subr.mxu0 0.0
    %486 = vmatpush1.xpose.msra.mxu0 0.0
    %487 = vmatprep.subr.mxu0 0.0
    %488 = vmatpush1.xpose.msra.mxu0 0.0
    %489 = vmatprep.subr.mxu0 0.0
    %490 = vmatpush1.xpose.msra.mxu0 0.0
    %491 = vmatprep.subr.mxu0 0.0
    %492 = vmatpush1.xpose.msra.mxu0 0.0
    %493 = vmatprep.subr.mxu0 0.0
    %494 = vmatpush1.xpose.msra.mxu0 0.0
    %495 = vmatprep.subr.mxu0 0.0
    %496 = vmatpush1.xpose.msra.mxu0 0.0
    %497 = vmatprep.subr.mxu0 0.0
    %498 = vmatpush1.xpose.msra.mxu0 0.0
    %499 = vmatprep.subr.mxu0 0.0
    %500 = vmatpush1.xpose.msra.mxu0 0.0
    %501 = vmatprep.subr.mxu0 0.0
    %502 = vmatpush1.xpose.msra.mxu0 0.0
    %503 = vmatprep.subr.mxu0 0.0
    %504 = vmatpush1.xpose.msra.mxu0 0.0
    %505 = vmatprep.subr.mxu0 0.0
    %506 = vmatpush1.xpose.msra.mxu0 0.0
    %507 = vmatprep.subr.mxu0 0.0
    %508 = vmatpush1.xpose.msra.mxu0 0.0
    %509 = vmatprep.subr.mxu0 0.0
    %510 = vmatpush1.xpose.msra.mxu0 0.0
    %511 = vmatprep.subr.mxu0 0.0
    %512 = vmatpush1.xpose.msra.mxu0 0.0
    %513 = vmatprep.subr.mxu0 0.0
    %514 = vmatpush1.xpose.msra.mxu0 0.0
    %515 = vmatprep.subr.mxu0 0.0
    %516 = vmatpush1.xpose.msra.mxu0 0.0
    %517 = vmatprep.mubr.f32.mxu0 0.0
    %518 = vmatmul.mubr.f32.gmra.mrb[0].mxu0 %v449
    %v519 = vpop.f32.mrb[0].mxu0
    %v520 = vadd.f32 0.0, %v519
    %v521 = vpop.f32.mrb[0].mxu0
    %522 = vdwg.mxu0
    %523 = vrot.lane.b32.xlu0 %v149, 96
    %v524 = vpop.permute.xlu0 %523
    %v525 = vsel %vm152, %v139, 0
    %v527 = vsel %vm152, %v524, 0
    %529 = vmatprep.subr.mxu0 0.0
    %530 = vmatpush1.xpose.msra.mxu0 %v527
    %531 = vmatprep.subr.mxu0 0.0
    %532 = vmatpush1.xpose.msra.mxu0 0.0
    %533 = vmatprep.subr.mxu0 0.0
    %534 = vmatpush1.xpose.msra.mxu0 0.0
    %535 = vmatprep.subr.mxu0 0.0
    %536 = vmatpush1.xpose.msra.mxu0 0.0
    %537 = vmatprep.subr.mxu0 0.0
    %538 = vmatpush1.xpose.msra.mxu0 0.0
    %539 = vmatprep.subr.mxu0 0.0
    %540 = vmatpush1.xpose.msra.mxu0 0.0
    %541 = vmatprep.subr.mxu0 0.0
    %542 = vmatpush1.xpose.msra.mxu0 0.0
    %543 = vmatprep.subr.mxu0 0.0
    %544 = vmatpush1.xpose.msra.mxu0 0.0
    %545 = vmatprep.subr.mxu0 0.0
    %546 = vmatpush1.xpose.msra.mxu0 0.0
    %547 = vmatprep.subr.mxu0 0.0
    %548 = vmatpush1.xpose.msra.mxu0 0.0
    %549 = vmatprep.subr.mxu0 0.0
    %550 = vmatpush1.xpose.msra.mxu0 0.0
    %551 = vmatprep.subr.mxu0 0.0
    %552 = vmatpush1.xpose.msra.mxu0 0.0
    %553 = vmatprep.subr.mxu0 0.0
    %554 = vmatpush1.xpose.msra.mxu0 0.0
    %555 = vmatprep.subr.mxu0 0.0
    %556 = vmatpush1.xpose.msra.mxu0 0.0
    %557 = vmatprep.subr.mxu0 0.0
    %558 = vmatpush1.xpose.msra.mxu0 0.0
    %559 = vmatprep.subr.mxu0 0.0
    %560 = vmatpush1.xpose.msra.mxu0 0.0
    %561 = vmatprep.subr.mxu0 0.0
    %562 = vmatpush1.xpose.msra.mxu0 0.0
    %563 = vmatprep.subr.mxu0 0.0
    %564 = vmatpush1.xpose.msra.mxu0 0.0
    %565 = vmatprep.subr.mxu0 0.0
    %566 = vmatpush1.xpose.msra.mxu0 0.0
    %567 = vmatprep.subr.mxu0 0.0
    %568 = vmatpush1.xpose.msra.mxu0 0.0
    %569 = vmatprep.subr.mxu0 0.0
    %570 = vmatpush1.xpose.msra.mxu0 0.0
    %571 = vmatprep.subr.mxu0 0.0
    %572 = vmatpush1.xpose.msra.mxu0 0.0
    %573 = vmatprep.subr.mxu0 0.0
    %574 = vmatpush1.xpose.msra.mxu0 0.0
    %575 = vmatprep.subr.mxu0 0.0
    %576 = vmatpush1.xpose.msra.mxu0 0.0
    %577 = vmatprep.subr.mxu0 0.0
    %578 = vmatpush1.xpose.msra.mxu0 0.0
    %579 = vmatprep.subr.mxu0 0.0
    %580 = vmatpush1.xpose.msra.mxu0 0.0
    %581 = vmatprep.subr.mxu0 0.0
    %582 = vmatpush1.xpose.msra.mxu0 0.0
    %583 = vmatprep.subr.mxu0 0.0
    %584 = vmatpush1.xpose.msra.mxu0 0.0
    %585 = vmatprep.subr.mxu0 0.0
    %586 = vmatpush1.xpose.msra.mxu0 0.0
    %587 = vmatprep.subr.mxu0 0.0
    %588 = vmatpush1.xpose.msra.mxu0 0.0
    %589 = vmatprep.subr.mxu0 0.0
    %590 = vmatpush1.xpose.msra.mxu0 0.0
    %591 = vmatprep.subr.mxu0 0.0
    %592 = vmatpush1.xpose.msra.mxu0 0.0
    %593 = vmatprep.mubr.f32.mxu0 0.0
    %594 = vmatmul.mubr.f32.gmra.mrb[0].mxu0 %v525
    %v595 = vpop.f32.mrb[0].mxu0
    %v596 = vadd.f32 0.0, %v595
    %v597 = vpop.f32.mrb[0].mxu0
    %598 = vdwg.mxu0
    %v599 = vsel %vm152, %v141, 0
    %601 = vmatprep.subr.mxu0 0.0
    %602 = vmatpush1.xpose.msra.mxu0 %v451
    %603 = vmatprep.subr.mxu0 0.0
    %604 = vmatpush1.xpose.msra.mxu0 0.0
    %605 = vmatprep.subr.mxu0 0.0
    %606 = vmatpush1.xpose.msra.mxu0 0.0
    %607 = vmatprep.subr.mxu0 0.0
    %608 = vmatpush1.xpose.msra.mxu0 0.0
    %609 = vmatprep.subr.mxu0 0.0
    %610 = vmatpush1.xpose.msra.mxu0 0.0
    %611 = vmatprep.subr.mxu0 0.0
    %612 = vmatpush1.xpose.msra.mxu0 0.0
    %613 = vmatprep.subr.mxu0 0.0
    %614 = vmatpush1.xpose.msra.mxu0 0.0
    %615 = vmatprep.subr.mxu0 0.0
    %616 = vmatpush1.xpose.msra.mxu0 0.0
    %617 = vmatprep.subr.mxu0 0.0
    %618 = vmatpush1.xpose.msra.mxu0 0.0
    %619 = vmatprep.subr.mxu0 0.0
    %620 = vmatpush1.xpose.msra.mxu0 0.0
    %621 = vmatprep.subr.mxu0 0.0
    %622 = vmatpush1.xpose.msra.mxu0 0.0
    %623 = vmatprep.subr.mxu0 0.0
    %624 = vmatpush1.xpose.msra.mxu0 0.0
    %625 = vmatprep.subr.mxu0 0.0
    %626 = vmatpush1.xpose.msra.mxu0 0.0
    %627 = vmatprep.subr.mxu0 0.0
    %628 = vmatpush1.xpose.msra.mxu0 0.0
    %629 = vmatprep.subr.mxu0 0.0
    %630 = vmatpush1.xpose.msra.mxu0 0.0
    %631 = vmatprep.subr.mxu0 0.0
    %632 = vmatpush1.xpose.msra.mxu0 0.0
    %633 = vmatprep.subr.mxu0 0.0
    %634 = vmatpush1.xpose.msra.mxu0 0.0
    %635 = vmatprep.subr.mxu0 0.0
    %636 = vmatpush1.xpose.msra.mxu0 0.0
    %637 = vmatprep.subr.mxu0 0.0
    %638 = vmatpush1.xpose.msra.mxu0 0.0
    %639 = vmatprep.subr.mxu0 0.0
    %640 = vmatpush1.xpose.msra.mxu0 0.0
    %641 = vmatprep.subr.mxu0 0.0
    %642 = vmatpush1.xpose.msra.mxu0 0.0
    %643 = vmatprep.subr.mxu0 0.0
    %644 = vmatpush1.xpose.msra.mxu0 0.0
    %645 = vmatprep.subr.mxu0 0.0
    %646 = vmatpush1.xpose.msra.mxu0 0.0
    %647 = vmatprep.subr.mxu0 0.0
    %648 = vmatpush1.xpose.msra.mxu0 0.0
    %649 = vmatprep.subr.mxu0 0.0
    %650 = vmatpush1.xpose.msra.mxu0 0.0
    %651 = vmatprep.subr.mxu0 0.0
    %652 = vmatpush1.xpose.msra.mxu0 0.0
    %653 = vmatprep.subr.mxu0 0.0
    %654 = vmatpush1.xpose.msra.mxu0 0.0
    %655 = vmatprep.subr.mxu0 0.0
    %656 = vmatpush1.xpose.msra.mxu0 0.0
    %657 = vmatprep.subr.mxu0 0.0
    %658 = vmatpush1.xpose.msra.mxu0 0.0
    %659 = vmatprep.subr.mxu0 0.0
    %660 = vmatpush1.xpose.msra.mxu0 0.0
    %661 = vmatprep.subr.mxu0 0.0
    %662 = vmatpush1.xpose.msra.mxu0 0.0
    %663 = vmatprep.subr.mxu0 0.0
    %664 = vmatpush1.xpose.msra.mxu0 0.0
    %665 = vmatprep.mubr.f32.mxu0 0.0
    %666 = vmatmul.mubr.f32.gmra.mrb[0].mxu0 %v599
    %v667 = vpop.f32.mrb[0].mxu0
    %v668 = vadd.f32 0.0, %v667
    %v669 = vpop.f32.mrb[0].mxu0
    %670 = vdwg.mxu0
    %v671 = vsel %vm152, %v143, 0
    %673 = vmatprep.subr.mxu0 0.0
    %674 = vmatpush1.xpose.msra.mxu0 %v527
    %675 = vmatprep.subr.mxu0 0.0
    %676 = vmatpush1.xpose.msra.mxu0 0.0
    %677 = vmatprep.subr.mxu0 0.0
    %678 = vmatpush1.xpose.msra.mxu0 0.0
    %679 = vmatprep.subr.mxu0 0.0
    %680 = vmatpush1.xpose.msra.mxu0 0.0
    %681 = vmatprep.subr.mxu0 0.0
    %682 = vmatpush1.xpose.msra.mxu0 0.0
    %683 = vmatprep.subr.mxu0 0.0
    %684 = vmatpush1.xpose.msra.mxu0 0.0
    %685 = vmatprep.subr.mxu0 0.0
    %686 = vmatpush1.xpose.msra.mxu0 0.0
    %687 = vmatprep.subr.mxu0 0.0
    %688 = vmatpush1.xpose.msra.mxu0 0.0
    %689 = vmatprep.subr.mxu0 0.0
    %690 = vmatpush1.xpose.msra.mxu0 0.0
    %691 = vmatprep.subr.mxu0 0.0
    %692 = vmatpush1.xpose.msra.mxu0 0.0
    %693 = vmatprep.subr.mxu0 0.0
    %694 = vmatpush1.xpose.msra.mxu0 0.0
    %695 = vmatprep.subr.mxu0 0.0
    %696 = vmatpush1.xpose.msra.mxu0 0.0
    %697 = vmatprep.subr.mxu0 0.0
    %698 = vmatpush1.xpose.msra.mxu0 0.0
    %699 = vmatprep.subr.mxu0 0.0
    %700 = vmatpush1.xpose.msra.mxu0 0.0
    %701 = vmatprep.subr.mxu0 0.0
    %702 = vmatpush1.xpose.msra.mxu0 0.0
    %703 = vmatprep.subr.mxu0 0.0
    %704 = vmatpush1.xpose.msra.mxu0 0.0
    %705 = vmatprep.subr.mxu0 0.0
    %706 = vmatpush1.xpose.msra.mxu0 0.0
    %707 = vmatprep.subr.mxu0 0.0
    %708 = vmatpush1.xpose.msra.mxu0 0.0
    %709 = vmatprep.subr.mxu0 0.0
    %710 = vmatpush1.xpose.msra.mxu0 0.0
    %711 = vmatprep.subr.mxu0 0.0
    %712 = vmatpush1.xpose.msra.mxu0 0.0
    %713 = vmatprep.subr.mxu0 0.0
    %714 = vmatpush1.xpose.msra.mxu0 0.0
    %715 = vmatprep.subr.mxu0 0.0
    %716 = vmatpush1.xpose.msra.mxu0 0.0
    %717 = vmatprep.subr.mxu0 0.0
    %718 = vmatpush1.xpose.msra.mxu0 0.0
    %719 = vmatprep.subr.mxu0 0.0
    %720 = vmatpush1.xpose.msra.mxu0 0.0
    %721 = vmatprep.subr.mxu0 0.0
    %722 = vmatpush1.xpose.msra.mxu0 0.0
    %723 = vmatprep.subr.mxu0 0.0
    %724 = vmatpush1.xpose.msra.mxu0 0.0
    %725 = vmatprep.subr.mxu0 0.0
    %726 = vmatpush1.xpose.msra.mxu0 0.0
    %727 = vmatprep.subr.mxu0 0.0
    %728 = vmatpush1.xpose.msra.mxu0 0.0
    %729 = vmatprep.subr.mxu0 0.0
    %730 = vmatpush1.xpose.msra.mxu0 0.0
    %731 = vmatprep.subr.mxu0 0.0
    %732 = vmatpush1.xpose.msra.mxu0 0.0
    %733 = vmatprep.subr.mxu0 0.0
    %734 = vmatpush1.xpose.msra.mxu0 0.0
    %735 = vmatprep.subr.mxu0 0.0
    %736 = vmatpush1.xpose.msra.mxu0 0.0
    %737 = vmatprep.mubr.f32.mxu0 0.0
    %738 = vmatmul.mubr.f32.gmra.mrb[0].mxu0 %v671
    %v739 = vpop.f32.mrb[0].mxu0
    %v740 = vadd.f32 0.0, %v739
    %v741 = vpop.f32.mrb[0].mxu0
    %742 = vdwg.mxu0
    %v743 = vlaneseq
    %v744 = vshrl.u32 %v743, 7
    %v745 = vlaneseq
    %v746 = vand.u32 %v745, 127
    %vm747 = vcmp.ge.s32.totalorder %v744, %v746
    %v748 = vsel %vm747, 1, 0
    %vm749 = vcmp.eq.s32.totalorder %v748, 1
    %v750 = vsel %vm749, %v224, -3.4028235e+38
    %v751 = vsel %vm749, %v300, -3.4028235e+38
    %v752 = vsel %vm749, %v372, -3.4028235e+38
    %v753 = vsel %vm749, %v444, -3.4028235e+38
    %v754 = vsel %vm749, %v520, -3.4028235e+38
    %v755 = vsel %vm749, %v596, -3.4028235e+38
    %v756 = vsel %vm749, %v668, -3.4028235e+38
    %v757 = vsel %vm749, %v740, -3.4028235e+38
    %v758 = vsel %vm152, %v750, -inf
    %759 = vmax.xlane.f32.xlu0 %v758
    %v760 = vpop.xlane.xlu0 %759
    %v761 = vsel %vm152, %v751, -inf
    %762 = vmax.xlane.f32.xlu0 %v761
    %v763 = vpop.xlane.xlu0 %762
    %v764 = vsel %vm152, %v752, -inf
    %765 = vmax.xlane.f32.xlu0 %v764
    %v766 = vpop.xlane.xlu0 %765
    %v767 = vsel %vm152, %v753, -inf
    %768 = vmax.xlane.f32.xlu0 %v767
    %v769 = vpop.xlane.xlu0 %768
    %v770 = vsel %vm152, %v754, -inf
    %771 = vmax.xlane.f32.xlu0 %v770
    %v772 = vpop.xlane.xlu0 %771
    %v773 = vsel %vm152, %v755, -inf
    %774 = vmax.xlane.f32.xlu0 %v773
    %v775 = vpop.xlane.xlu0 %774
    %v776 = vsel %vm152, %v756, -inf
    %777 = vmax.xlane.f32.xlu0 %v776
    %v778 = vpop.xlane.xlu0 %777
    %v779 = vsel %vm152, %v757, -inf
    %780 = vmax.xlane.f32.xlu0 %v779
    %v781 = vpop.xlane.xlu0 %780
    %v782 = vsub.f32 %v750, %v760
    %v783 = vsub.f32 %v751, %v763
    %v784 = vsub.f32 %v752, %v766
    %v785 = vsub.f32 %v753, %v769
    %v786 = vsub.f32 %v754, %v772
    %v787 = vsub.f32 %v755, %v775
    %v788 = vsub.f32 %v756, %v778
    %v789 = vsub.f32 %v757, %v781
    %v790 = vmul.f32 %v782, 1.442695
    %v791 = vpow.pop %v790
    %v792 = vmul.f32 %v783, 1.442695
    %v793 = vpow.pop %v792
    %v794 = vmul.f32 %v784, 1.442695
    %v795 = vpow.pop %v794
    %v796 = vmul.f32 %v785, 1.442695
    %v797 = vpow.pop %v796
    %v798 = vmul.f32 %v786, 1.442695
    %v799 = vpow.pop %v798
    %v800 = vmul.f32 %v787, 1.442695
    %v801 = vpow.pop %v800
    %v802 = vmul.f32 %v788, 1.442695
    %v803 = vpow.pop %v802
    %v804 = vmul.f32 %v789, 1.442695
    %v805 = vpow.pop %v804
    %v806 = vsel %vm152, %v791, 0.0
    %807 = vadd.xlane.f32.xlu0 %v806
    %v808 = vpop.xlane.xlu0 %807
    %v809 = vsel %vm152, %v793, 0.0
    %810 = vadd.xlane.f32.xlu0 %v809
    %v811 = vpop.xlane.xlu0 %810
    %v812 = vsel %vm152, %v795, 0.0
    %813 = vadd.xlane.f32.xlu0 %v812
    %v814 = vpop.xlane.xlu0 %813
    %v815 = vsel %vm152, %v797, 0.0
    %816 = vadd.xlane.f32.xlu0 %v815
    %v817 = vpop.xlane.xlu0 %816
    %v818 = vsel %vm152, %v799, 0.0
    %819 = vadd.xlane.f32.xlu0 %v818
    %v820 = vpop.xlane.xlu0 %819
    %v821 = vsel %vm152, %v801, 0.0
    %822 = vadd.xlane.f32.xlu0 %v821
    %v823 = vpop.xlane.xlu0 %822
    %v824 = vsel %vm152, %v803, 0.0
    %825 = vadd.xlane.f32.xlu0 %v824
    %v826 = vpop.xlane.xlu0 %825
    %v827 = vsel %vm152, %v805, 0.0
    %828 = vadd.xlane.f32.xlu0 %v827
    %v829 = vpop.xlane.xlu0 %828
    %v830 = vrcp.pop %v808
    %v831 = vrcp.pop %v811
    %v832 = vrcp.pop %v814
    %v833 = vrcp.pop %v817
    %v834 = vrcp.pop %v820
    %v835 = vrcp.pop %v823
    %v836 = vrcp.pop %v826
    %v837 = vrcp.pop %v829
    %v838 = vmul.f32 %v791, %v830
    %v839 = vmul.f32 %v793, %v831
    %v840 = vmul.f32 %v795, %v832
    %v841 = vmul.f32 %v797, %v833
    %v842 = vmul.f32 %v799, %v834
    %v843 = vmul.f32 %v801, %v835
    %v844 = vmul.f32 %v803, %v836
    %v845 = vmul.f32 %v805, %v837
    %846 = vrot.lane.b32.xlu0 %v120, 80
    %v847 = vpop.permute.xlu0 %846
    %v850 = vsel %vm152, %v838, 0
    %852 = vmatprep.subr.mxu0 0.0
    %853 = vmatpush1.msra.mxu0 %v847
    %854 = vmatprep.subr.mxu0 0.0
    %855 = vmatpush1.msra.mxu0 0.0
    %856 = vmatprep.subr.mxu0 0.0
    %857 = vmatpush1.msra.mxu0 0.0
    %858 = vmatprep.subr.mxu0 0.0
    %859 = vmatpush1.msra.mxu0 0.0
    %860 = vmatprep.subr.mxu0 0.0
    %861 = vmatpush1.msra.mxu0 0.0
    %862 = vmatprep.subr.mxu0 0.0
    %863 = vmatpush1.msra.mxu0 0.0
    %864 = vmatprep.subr.mxu0 0.0
    %865 = vmatpush1.msra.mxu0 0.0
    %866 = vmatprep.subr.mxu0 0.0
    %867 = vmatpush1.msra.mxu0 0.0
    %868 = vmatprep.subr.mxu0 0.0
    %869 = vmatpush1.msra.mxu0 0.0
    %870 = vmatprep.subr.mxu0 0.0
    %871 = vmatpush1.msra.mxu0 0.0
    %872 = vmatprep.subr.mxu0 0.0
    %873 = vmatpush1.msra.mxu0 0.0
    %874 = vmatprep.subr.mxu0 0.0
    %875 = vmatpush1.msra.mxu0 0.0
    %876 = vmatprep.subr.mxu0 0.0
    %877 = vmatpush1.msra.mxu0 0.0
    %878 = vmatprep.subr.mxu0 0.0
    %879 = vmatpush1.msra.mxu0 0.0
    %880 = vmatprep.subr.mxu0 0.0
    %881 = vmatpush1.msra.mxu0 0.0
    %882 = vmatprep.subr.mxu0 0.0
    %883 = vmatpush1.msra.mxu0 0.0
    %884 = vmatprep.subr.mxu0 0.0
    %885 = vmatpush1.msra.mxu0 0.0
    %886 = vmatprep.subr.mxu0 0.0
    %887 = vmatpush1.msra.mxu0 0.0
    %888 = vmatprep.subr.mxu0 0.0
    %889 = vmatpush1.msra.mxu0 0.0
    %890 = vmatprep.subr.mxu0 0.0
    %891 = vmatpush1.msra.mxu0 0.0
    %892 = vmatprep.subr.mxu0 0.0
    %893 = vmatpush1.msra.mxu0 0.0
    %894 = vmatprep.subr.mxu0 0.0
    %895 = vmatpush1.msra.mxu0 0.0
    %896 = vmatprep.subr.mxu0 0.0
    %897 = vmatpush1.msra.mxu0 0.0
    %898 = vmatprep.subr.mxu0 0.0
    %899 = vmatpush1.msra.mxu0 0.0
    %900 = vmatprep.subr.mxu0 0.0
    %901 = vmatpush1.msra.mxu0 0.0
    %902 = vmatprep.subr.mxu0 0.0
    %903 = vmatpush1.msra.mxu0 0.0
    %904 = vmatprep.subr.mxu0 0.0
    %905 = vmatpush1.msra.mxu0 0.0
    %906 = vmatprep.subr.mxu0 0.0
    %907 = vmatpush1.msra.mxu0 0.0
    %908 = vmatprep.subr.mxu0 0.0
    %909 = vmatpush1.msra.mxu0 0.0
    %910 = vmatprep.subr.mxu0 0.0
    %911 = vmatpush1.msra.mxu0 0.0
    %912 = vmatprep.subr.mxu0 0.0
    %913 = vmatpush1.msra.mxu0 0.0
    %914 = vmatprep.subr.mxu0 0.0
    %915 = vmatpush1.msra.mxu0 0.0
    %916 = vmatprep.mubr.f32.mxu0 0.0
    %917 = vmatmul.mubr.f32.gmra.mrb[0].mxu0 %v850
    %v918 = vpop.f32.mrb[0].mxu0
    %v919 = vadd.f32 0.0, %v918
    %v920 = vpop.f32.mrb[0].mxu0
    %921 = vdwg.mxu0
    %922 = vrot.lane.b32.xlu0 %v125, 80
    %v923 = vpop.permute.xlu0 %922
    %v926 = vsel %vm152, %v839, 0
    %928 = vmatprep.subr.mxu0 0.0
    %929 = vmatpush1.msra.mxu0 %v923
    %930 = vmatprep.subr.mxu0 0.0
    %931 = vmatpush1.msra.mxu0 0.0
    %932 = vmatprep.subr.mxu0 0.0
    %933 = vmatpush1.msra.mxu0 0.0
    %934 = vmatprep.subr.mxu0 0.0
    %935 = vmatpush1.msra.mxu0 0.0
    %936 = vmatprep.subr.mxu0 0.0
    %937 = vmatpush1.msra.mxu0 0.0
    %938 = vmatprep.subr.mxu0 0.0
    %939 = vmatpush1.msra.mxu0 0.0
    %940 = vmatprep.subr.mxu0 0.0
    %941 = vmatpush1.msra.mxu0 0.0
    %942 = vmatprep.subr.mxu0 0.0
    %943 = vmatpush1.msra.mxu0 0.0
    %944 = vmatprep.subr.mxu0 0.0
    %945 = vmatpush1.msra.mxu0 0.0
    %946 = vmatprep.subr.mxu0 0.0
    %947 = vmatpush1.msra.mxu0 0.0
    %948 = vmatprep.subr.mxu0 0.0
    %949 = vmatpush1.msra.mxu0 0.0
    %950 = vmatprep.subr.mxu0 0.0
    %951 = vmatpush1.msra.mxu0 0.0
    %952 = vmatprep.subr.mxu0 0.0
    %953 = vmatpush1.msra.mxu0 0.0
    %954 = vmatprep.subr.mxu0 0.0
    %955 = vmatpush1.msra.mxu0 0.0
    %956 = vmatprep.subr.mxu0 0.0
    %957 = vmatpush1.msra.mxu0 0.0
    %958 = vmatprep.subr.mxu0 0.0
    %959 = vmatpush1.msra.mxu0 0.0
    %960 = vmatprep.subr.mxu0 0.0
    %961 = vmatpush1.msra.mxu0 0.0
    %962 = vmatprep.subr.mxu0 0.0
    %963 = vmatpush1.msra.mxu0 0.0
    %964 = vmatprep.subr.mxu0 0.0
    %965 = vmatpush1.msra.mxu0 0.0
    %966 = vmatprep.subr.mxu0 0.0
    %967 = vmatpush1.msra.mxu0 0.0
    %968 = vmatprep.subr.mxu0 0.0
    %969 = vmatpush1.msra.mxu0 0.0
    %970 = vmatprep.subr.mxu0 0.0
    %971 = vmatpush1.msra.mxu0 0.0
    %972 = vmatprep.subr.mxu0 0.0
    %973 = vmatpush1.msra.mxu0 0.0
    %974 = vmatprep.subr.mxu0 0.0
    %975 = vmatpush1.msra.mxu0 0.0
    %976 = vmatprep.subr.mxu0 0.0
    %977 = vmatpush1.msra.mxu0 0.0
    %978 = vmatprep.subr.mxu0 0.0
    %979 = vmatpush1.msra.mxu0 0.0
    %980 = vmatprep.subr.mxu0 0.0
    %981 = vmatpush1.msra.mxu0 0.0
    %982 = vmatprep.subr.mxu0 0.0
    %983 = vmatpush1.msra.mxu0 0.0
    %984 = vmatprep.subr.mxu0 0.0
    %985 = vmatpush1.msra.mxu0 0.0
    %986 = vmatprep.subr.mxu0 0.0
    %987 = vmatpush1.msra.mxu0 0.0
    %988 = vmatprep.subr.mxu0 0.0
    %989 = vmatpush1.msra.mxu0 0.0
    %990 = vmatprep.subr.mxu0 0.0
    %991 = vmatpush1.msra.mxu0 0.0
    %992 = vmatprep.mubr.f32.mxu0 0.0
    %993 = vmatmul.mubr.f32.gmra.mrb[0].mxu0 %v926
    %v994 = vpop.f32.mrb[0].mxu0
    %v995 = vadd.f32 0.0, %v994
    %v996 = vpop.f32.mrb[0].mxu0
    %997 = vdwg.mxu0
    %v999 = vsel %vm152, %v840, 0
    %1001 = vmatprep.subr.mxu0 0.0
    %1002 = vmatpush1.msra.mxu0 %v847
    %1003 = vmatprep.subr.mxu0 0.0
    %1004 = vmatpush1.msra.mxu0 0.0
    %1005 = vmatprep.subr.mxu0 0.0
    %1006 = vmatpush1.msra.mxu0 0.0
    %1007 = vmatprep.subr.mxu0 0.0
    %1008 = vmatpush1.msra.mxu0 0.0
    %1009 = vmatprep.subr.mxu0 0.0
    %1010 = vmatpush1.msra.mxu0 0.0
    %1011 = vmatprep.subr.mxu0 0.0
    %1012 = vmatpush1.msra.mxu0 0.0
    %1013 = vmatprep.subr.mxu0 0.0
    %1014 = vmatpush1.msra.mxu0 0.0
    %1015 = vmatprep.subr.mxu0 0.0
    %1016 = vmatpush1.msra.mxu0 0.0
    %1017 = vmatprep.subr.mxu0 0.0
    %1018 = vmatpush1.msra.mxu0 0.0
    %1019 = vmatprep.subr.mxu0 0.0
    %1020 = vmatpush1.msra.mxu0 0.0
    %1021 = vmatprep.subr.mxu0 0.0
    %1022 = vmatpush1.msra.mxu0 0.0
    %1023 = vmatprep.subr.mxu0 0.0
    %1024 = vmatpush1.msra.mxu0 0.0
    %1025 = vmatprep.subr.mxu0 0.0
    %1026 = vmatpush1.msra.mxu0 0.0
    %1027 = vmatprep.subr.mxu0 0.0
    %1028 = vmatpush1.msra.mxu0 0.0
    %1029 = vmatprep.subr.mxu0 0.0
    %1030 = vmatpush1.msra.mxu0 0.0
    %1031 = vmatprep.subr.mxu0 0.0
    %1032 = vmatpush1.msra.mxu0 0.0
    %1033 = vmatprep.subr.mxu0 0.0
    %1034 = vmatpush1.msra.mxu0 0.0
    %1035 = vmatprep.subr.mxu0 0.0
    %1036 = vmatpush1.msra.mxu0 0.0
    %1037 = vmatprep.subr.mxu0 0.0
    %1038 = vmatpush1.msra.mxu0 0.0
    %1039 = vmatprep.subr.mxu0 0.0
    %1040 = vmatpush1.msra.mxu0 0.0
    %1041 = vmatprep.subr.mxu0 0.0
    %1042 = vmatpush1.msra.mxu0 0.0
    %1043 = vmatprep.subr.mxu0 0.0
    %1044 = vmatpush1.msra.mxu0 0.0
    %1045 = vmatprep.subr.mxu0 0.0
    %1046 = vmatpush1.msra.mxu0 0.0
    %1047 = vmatprep.subr.mxu0 0.0
    %1048 = vmatpush1.msra.mxu0 0.0
    %1049 = vmatprep.subr.mxu0 0.0
    %1050 = vmatpush1.msra.mxu0 0.0
    %1051 = vmatprep.subr.mxu0 0.0
    %1052 = vmatpush1.msra.mxu0 0.0
    %1053 = vmatprep.subr.mxu0 0.0
    %1054 = vmatpush1.msra.mxu0 0.0
    %1055 = vmatprep.subr.mxu0 0.0
    %1056 = vmatpush1.msra.mxu0 0.0
    %1057 = vmatprep.subr.mxu0 0.0
    %1058 = vmatpush1.msra.mxu0 0.0
    %1059 = vmatprep.subr.mxu0 0.0
    %1060 = vmatpush1.msra.mxu0 0.0
    %1061 = vmatprep.subr.mxu0 0.0
    %1062 = vmatpush1.msra.mxu0 0.0
    %1063 = vmatprep.subr.mxu0 0.0
    %1064 = vmatpush1.msra.mxu0 0.0
    %1065 = vmatprep.mubr.f32.mxu0 0.0
    %1066 = vmatmul.mubr.f32.gmra.mrb[0].mxu0 %v999
    %v1067 = vpop.f32.mrb[0].mxu0
    %v1068 = vadd.f32 0.0, %v1067
    %v1069 = vpop.f32.mrb[0].mxu0
    %1070 = vdwg.mxu0
    %v1072 = vsel %vm152, %v841, 0
    %1074 = vmatprep.subr.mxu0 0.0
    %1075 = vmatpush1.msra.mxu0 %v923
    %1076 = vmatprep.subr.mxu0 0.0
    %1077 = vmatpush1.msra.mxu0 0.0
    %1078 = vmatprep.subr.mxu0 0.0
    %1079 = vmatpush1.msra.mxu0 0.0
    %1080 = vmatprep.subr.mxu0 0.0
    %1081 = vmatpush1.msra.mxu0 0.0
    %1082 = vmatprep.subr.mxu0 0.0
    %1083 = vmatpush1.msra.mxu0 0.0
    %1084 = vmatprep.subr.mxu0 0.0
    %1085 = vmatpush1.msra.mxu0 0.0
    %1086 = vmatprep.subr.mxu0 0.0
    %1087 = vmatpush1.msra.mxu0 0.0
    %1088 = vmatprep.subr.mxu0 0.0
    %1089 = vmatpush1.msra.mxu0 0.0
    %1090 = vmatprep.subr.mxu0 0.0
    %1091 = vmatpush1.msra.mxu0 0.0
    %1092 = vmatprep.subr.mxu0 0.0
    %1093 = vmatpush1.msra.mxu0 0.0
    %1094 = vmatprep.subr.mxu0 0.0
    %1095 = vmatpush1.msra.mxu0 0.0
    %1096 = vmatprep.subr.mxu0 0.0
    %1097 = vmatpush1.msra.mxu0 0.0
    %1098 = vmatprep.subr.mxu0 0.0
    %1099 = vmatpush1.msra.mxu0 0.0
    %1100 = vmatprep.subr.mxu0 0.0
    %1101 = vmatpush1.msra.mxu0 0.0
    %1102 = vmatprep.subr.mxu0 0.0
    %1103 = vmatpush1.msra.mxu0 0.0
    %1104 = vmatprep.subr.mxu0 0.0
    %1105 = vmatpush1.msra.mxu0 0.0
    %1106 = vmatprep.subr.mxu0 0.0
    %1107 = vmatpush1.msra.mxu0 0.0
    %1108 = vmatprep.subr.mxu0 0.0
    %1109 = vmatpush1.msra.mxu0 0.0
    %1110 = vmatprep.subr.mxu0 0.0
    %1111 = vmatpush1.msra.mxu0 0.0
    %1112 = vmatprep.subr.mxu0 0.0
    %1113 = vmatpush1.msra.mxu0 0.0
    %1114 = vmatprep.subr.mxu0 0.0
    %1115 = vmatpush1.msra.mxu0 0.0
    %1116 = vmatprep.subr.mxu0 0.0
    %1117 = vmatpush1.msra.mxu0 0.0
    %1118 = vmatprep.subr.mxu0 0.0
    %1119 = vmatpush1.msra.mxu0 0.0
    %1120 = vmatprep.subr.mxu0 0.0
    %1121 = vmatpush1.msra.mxu0 0.0
    %1122 = vmatprep.subr.mxu0 0.0
    %1123 = vmatpush1.msra.mxu0 0.0
    %1124 = vmatprep.subr.mxu0 0.0
    %1125 = vmatpush1.msra.mxu0 0.0
    %1126 = vmatprep.subr.mxu0 0.0
    %1127 = vmatpush1.msra.mxu0 0.0
    %1128 = vmatprep.subr.mxu0 0.0
    %1129 = vmatpush1.msra.mxu0 0.0
    %1130 = vmatprep.subr.mxu0 0.0
    %1131 = vmatpush1.msra.mxu0 0.0
    %1132 = vmatprep.subr.mxu0 0.0
    %1133 = vmatpush1.msra.mxu0 0.0
    %1134 = vmatprep.subr.mxu0 0.0
    %1135 = vmatpush1.msra.mxu0 0.0
    %1136 = vmatprep.subr.mxu0 0.0
    %1137 = vmatpush1.msra.mxu0 0.0
    %1138 = vmatprep.mubr.f32.mxu0 0.0
    %1139 = vmatmul.mubr.f32.gmra.mrb[0].mxu0 %v1072
    %v1140 = vpop.f32.mrb[0].mxu0
    %v1141 = vadd.f32 0.0, %v1140
    %v1142 = vpop.f32.mrb[0].mxu0
    %1143 = vdwg.mxu0
    %1144 = vrot.lane.b32.xlu0 %v147, 80
    %v1145 = vpop.permute.xlu0 %1144
    %v1148 = vsel %vm152, %v842, 0
    %1150 = vmatprep.subr.mxu0 0.0
    %1151 = vmatpush1.msra.mxu0 %v1145
    %1152 = vmatprep.subr.mxu0 0.0
    %1153 = vmatpush1.msra.mxu0 0.0
    %1154 = vmatprep.subr.mxu0 0.0
    %1155 = vmatpush1.msra.mxu0 0.0
    %1156 = vmatprep.subr.mxu0 0.0
    %1157 = vmatpush1.msra.mxu0 0.0
    %1158 = vmatprep.subr.mxu0 0.0
    %1159 = vmatpush1.msra.mxu0 0.0
    %1160 = vmatprep.subr.mxu0 0.0
    %1161 = vmatpush1.msra.mxu0 0.0
    %1162 = vmatprep.subr.mxu0 0.0
    %1163 = vmatpush1.msra.mxu0 0.0
    %1164 = vmatprep.subr.mxu0 0.0
    %1165 = vmatpush1.msra.mxu0 0.0
    %1166 = vmatprep.subr.mxu0 0.0
    %1167 = vmatpush1.msra.mxu0 0.0
    %1168 = vmatprep.subr.mxu0 0.0
    %1169 = vmatpush1.msra.mxu0 0.0
    %1170 = vmatprep.subr.mxu0 0.0
    %1171 = vmatpush1.msra.mxu0 0.0
    %1172 = vmatprep.subr.mxu0 0.0
    %1173 = vmatpush1.msra.mxu0 0.0
    %1174 = vmatprep.subr.mxu0 0.0
    %1175 = vmatpush1.msra.mxu0 0.0
    %1176 = vmatprep.subr.mxu0 0.0
    %1177 = vmatpush1.msra.mxu0 0.0
    %1178 = vmatprep.subr.mxu0 0.0
    %1179 = vmatpush1.msra.mxu0 0.0
    %1180 = vmatprep.subr.mxu0 0.0
    %1181 = vmatpush1.msra.mxu0 0.0
    %1182 = vmatprep.subr.mxu0 0.0
    %1183 = vmatpush1.msra.mxu0 0.0
    %1184 = vmatprep.subr.mxu0 0.0
    %1185 = vmatpush1.msra.mxu0 0.0
    %1186 = vmatprep.subr.mxu0 0.0
    %1187 = vmatpush1.msra.mxu0 0.0
    %1188 = vmatprep.subr.mxu0 0.0
    %1189 = vmatpush1.msra.mxu0 0.0
    %1190 = vmatprep.subr.mxu0 0.0
    %1191 = vmatpush1.msra.mxu0 0.0
    %1192 = vmatprep.subr.mxu0 0.0
    %1193 = vmatpush1.msra.mxu0 0.0
    %1194 = vmatprep.subr.mxu0 0.0
    %1195 = vmatpush1.msra.mxu0 0.0
    %1196 = vmatprep.subr.mxu0 0.0
    %1197 = vmatpush1.msra.mxu0 0.0
    %1198 = vmatprep.subr.mxu0 0.0
    %1199 = vmatpush1.msra.mxu0 0.0
    %1200 = vmatprep.subr.mxu0 0.0
    %1201 = vmatpush1.msra.mxu0 0.0
    %1202 = vmatprep.subr.mxu0 0.0
    %1203 = vmatpush1.msra.mxu0 0.0
    %1204 = vmatprep.subr.mxu0 0.0
    %1205 = vmatpush1.msra.mxu0 0.0
    %1206 = vmatprep.subr.mxu0 0.0
    %1207 = vmatpush1.msra.mxu0 0.0
    %1208 = vmatprep.subr.mxu0 0.0
    %1209 = vmatpush1.msra.mxu0 0.0
    %1210 = vmatprep.subr.mxu0 0.0
    %1211 = vmatpush1.msra.mxu0 0.0
    %1212 = vmatprep.subr.mxu0 0.0
    %1213 = vmatpush1.msra.mxu0 0.0
    %1214 = vmatprep.mubr.f32.mxu0 0.0
    %1215 = vmatmul.mubr.f32.gmra.mrb[0].mxu0 %v1148
    %v1216 = vpop.f32.mrb[0].mxu0
    %v1217 = vadd.f32 0.0, %v1216
    %v1218 = vpop.f32.mrb[0].mxu0
    %1219 = vdwg.mxu0
    %1220 = vrot.lane.b32.xlu0 %v149, 80
    %v1221 = vpop.permute.xlu0 %1220
    %v1224 = vsel %vm152, %v843, 0
    %1226 = vmatprep.subr.mxu0 0.0
    %1227 = vmatpush1.msra.mxu0 %v1221
    %1228 = vmatprep.subr.mxu0 0.0
    %1229 = vmatpush1.msra.mxu0 0.0
    %1230 = vmatprep.subr.mxu0 0.0
    %1231 = vmatpush1.msra.mxu0 0.0
    %1232 = vmatprep.subr.mxu0 0.0
    %1233 = vmatpush1.msra.mxu0 0.0
    %1234 = vmatprep.subr.mxu0 0.0
    %1235 = vmatpush1.msra.mxu0 0.0
    %1236 = vmatprep.subr.mxu0 0.0
    %1237 = vmatpush1.msra.mxu0 0.0
    %1238 = vmatprep.subr.mxu0 0.0
    %1239 = vmatpush1.msra.mxu0 0.0
    %1240 = vmatprep.subr.mxu0 0.0
    %1241 = vmatpush1.msra.mxu0 0.0
    %1242 = vmatprep.subr.mxu0 0.0
    %1243 = vmatpush1.msra.mxu0 0.0
    %1244 = vmatprep.subr.mxu0 0.0
    %1245 = vmatpush1.msra.mxu0 0.0
    %1246 = vmatprep.subr.mxu0 0.0
    %1247 = vmatpush1.msra.mxu0 0.0
    %1248 = vmatprep.subr.mxu0 0.0
    %1249 = vmatpush1.msra.mxu0 0.0
    %1250 = vmatprep.subr.mxu0 0.0
    %1251 = vmatpush1.msra.mxu0 0.0
    %1252 = vmatprep.subr.mxu0 0.0
    %1253 = vmatpush1.msra.mxu0 0.0
    %1254 = vmatprep.subr.mxu0 0.0
    %1255 = vmatpush1.msra.mxu0 0.0
    %1256 = vmatprep.subr.mxu0 0.0
    %1257 = vmatpush1.msra.mxu0 0.0
    %1258 = vmatprep.subr.mxu0 0.0
    %1259 = vmatpush1.msra.mxu0 0.0
    %1260 = vmatprep.subr.mxu0 0.0
    %1261 = vmatpush1.msra.mxu0 0.0
    %1262 = vmatprep.subr.mxu0 0.0
    %1263 = vmatpush1.msra.mxu0 0.0
    %1264 = vmatprep.subr.mxu0 0.0
    %1265 = vmatpush1.msra.mxu0 0.0
    %1266 = vmatprep.subr.mxu0 0.0
    %1267 = vmatpush1.msra.mxu0 0.0
    %1268 = vmatprep.subr.mxu0 0.0
    %1269 = vmatpush1.msra.mxu0 0.0
    %1270 = vmatprep.subr.mxu0 0.0
    %1271 = vmatpush1.msra.mxu0 0.0
    %1272 = vmatprep.subr.mxu0 0.0
    %1273 = vmatpush1.msra.mxu0 0.0
    %1274 = vmatprep.subr.mxu0 0.0
    %1275 = vmatpush1.msra.mxu0 0.0
    %1276 = vmatprep.subr.mxu0 0.0
    %1277 = vmatpush1.msra.mxu0 0.0
    %1278 = vmatprep.subr.mxu0 0.0
    %1279 = vmatpush1.msra.mxu0 0.0
    %1280 = vmatprep.subr.mxu0 0.0
    %1281 = vmatpush1.msra.mxu0 0.0
    %1282 = vmatprep.subr.mxu0 0.0
    %1283 = vmatpush1.msra.mxu0 0.0
    %1284 = vmatprep.subr.mxu0 0.0
    %1285 = vmatpush1.msra.mxu0 0.0
    %1286 = vmatprep.subr.mxu0 0.0
    %1287 = vmatpush1.msra.mxu0 0.0
    %1288 = vmatprep.subr.mxu0 0.0
    %1289 = vmatpush1.msra.mxu0 0.0
    %1290 = vmatprep.mubr.f32.mxu0 0.0
    %1291 = vmatmul.mubr.f32.gmra.mrb[0].mxu0 %v1224
    %v1292 = vpop.f32.mrb[0].mxu0
    %v1293 = vadd.f32 0.0, %v1292
    %v1294 = vpop.f32.mrb[0].mxu0
    %1295 = vdwg.mxu0
    %v1297 = vsel %vm152, %v844, 0
    %1299 = vmatprep.subr.mxu0 0.0
    %1300 = vmatpush1.msra.mxu0 %v1145
    %1301 = vmatprep.subr.mxu0 0.0
    %1302 = vmatpush1.msra.mxu0 0.0
    %1303 = vmatprep.subr.mxu0 0.0
    %1304 = vmatpush1.msra.mxu0 0.0
    %1305 = vmatprep.subr.mxu0 0.0
    %1306 = vmatpush1.msra.mxu0 0.0
    %1307 = vmatprep.subr.mxu0 0.0
    %1308 = vmatpush1.msra.mxu0 0.0
    %1309 = vmatprep.subr.mxu0 0.0
    %1310 = vmatpush1.msra.mxu0 0.0
    %1311 = vmatprep.subr.mxu0 0.0
    %1312 = vmatpush1.msra.mxu0 0.0
    %1313 = vmatprep.subr.mxu0 0.0
    %1314 = vmatpush1.msra.mxu0 0.0
    %1315 = vmatprep.subr.mxu0 0.0
    %1316 = vmatpush1.msra.mxu0 0.0
    %1317 = vmatprep.subr.mxu0 0.0
    %1318 = vmatpush1.msra.mxu0 0.0
    %1319 = vmatprep.subr.mxu0 0.0
    %1320 = vmatpush1.msra.mxu0 0.0
    %1321 = vmatprep.subr.mxu0 0.0
    %1322 = vmatpush1.msra.mxu0 0.0
    %1323 = vmatprep.subr.mxu0 0.0
    %1324 = vmatpush1.msra.mxu0 0.0
    %1325 = vmatprep.subr.mxu0 0.0
    %1326 = vmatpush1.msra.mxu0 0.0
    %1327 = vmatprep.subr.mxu0 0.0
    %1328 = vmatpush1.msra.mxu0 0.0
    %1329 = vmatprep.subr.mxu0 0.0
    %1330 = vmatpush1.msra.mxu0 0.0
    %1331 = vmatprep.subr.mxu0 0.0
    %1332 = vmatpush1.msra.mxu0 0.0
    %1333 = vmatprep.subr.mxu0 0.0
    %1334 = vmatpush1.msra.mxu0 0.0
    %1335 = vmatprep.subr.mxu0 0.0
    %1336 = vmatpush1.msra.mxu0 0.0
    %1337 = vmatprep.subr.mxu0 0.0
    %1338 = vmatpush1.msra.mxu0 0.0
    %1339 = vmatprep.subr.mxu0 0.0
    %1340 = vmatpush1.msra.mxu0 0.0
    %1341 = vmatprep.subr.mxu0 0.0
    %1342 = vmatpush1.msra.mxu0 0.0
    %1343 = vmatprep.subr.mxu0 0.0
    %1344 = vmatpush1.msra.mxu0 0.0
    %1345 = vmatprep.subr.mxu0 0.0
    %1346 = vmatpush1.msra.mxu0 0.0
    %1347 = vmatprep.subr.mxu0 0.0
    %1348 = vmatpush1.msra.mxu0 0.0
    %1349 = vmatprep.subr.mxu0 0.0
    %1350 = vmatpush1.msra.mxu0 0.0
    %1351 = vmatprep.subr.mxu0 0.0
    %1352 = vmatpush1.msra.mxu0 0.0
    %1353 = vmatprep.subr.mxu0 0.0
    %1354 = vmatpush1.msra.mxu0 0.0
    %1355 = vmatprep.subr.mxu0 0.0
    %1356 = vmatpush1.msra.mxu0 0.0
    %1357 = vmatprep.subr.mxu0 0.0
    %1358 = vmatpush1.msra.mxu0 0.0
    %1359 = vmatprep.subr.mxu0 0.0
    %1360 = vmatpush1.msra.mxu0 0.0
    %1361 = vmatprep.subr.mxu0 0.0
    %1362 = vmatpush1.msra.mxu0 0.0
    %1363 = vmatprep.mubr.f32.mxu0 0.0
    %1364 = vmatmul.mubr.f32.gmra.mrb[0].mxu0 %v1297
    %v1365 = vpop.f32.mrb[0].mxu0
    %v1366 = vadd.f32 0.0, %v1365
    %v1367 = vpop.f32.mrb[0].mxu0
    %1368 = vdwg.mxu0
    %v1370 = vsel %vm152, %v845, 0
    %1372 = vmatprep.subr.mxu0 0.0
    %1373 = vmatpush1.msra.mxu0 %v1221
    %1374 = vmatprep.subr.mxu0 0.0
    %1375 = vmatpush1.msra.mxu0 0.0
    %1376 = vmatprep.subr.mxu0 0.0
    %1377 = vmatpush1.msra.mxu0 0.0
    %1378 = vmatprep.subr.mxu0 0.0
    %1379 = vmatpush1.msra.mxu0 0.0
    %1380 = vmatprep.subr.mxu0 0.0
    %1381 = vmatpush1.msra.mxu0 0.0
    %1382 = vmatprep.subr.mxu0 0.0
    %1383 = vmatpush1.msra.mxu0 0.0
    %1384 = vmatprep.subr.mxu0 0.0
    %1385 = vmatpush1.msra.mxu0 0.0
    %1386 = vmatprep.subr.mxu0 0.0
    %1387 = vmatpush1.msra.mxu0 0.0
    %1388 = vmatprep.subr.mxu0 0.0
    %1389 = vmatpush1.msra.mxu0 0.0
    %1390 = vmatprep.subr.mxu0 0.0
    %1391 = vmatpush1.msra.mxu0 0.0
    %1392 = vmatprep.subr.mxu0 0.0
    %1393 = vmatpush1.msra.mxu0 0.0
    %1394 = vmatprep.subr.mxu0 0.0
    %1395 = vmatpush1.msra.mxu0 0.0
    %1396 = vmatprep.subr.mxu0 0.0
    %1397 = vmatpush1.msra.mxu0 0.0
    %1398 = vmatprep.subr.mxu0 0.0
    %1399 = vmatpush1.msra.mxu0 0.0
    %1400 = vmatprep.subr.mxu0 0.0
    %1401 = vmatpush1.msra.mxu0 0.0
    %1402 = vmatprep.subr.mxu0 0.0
    %1403 = vmatpush1.msra.mxu0 0.0
    %1404 = vmatprep.subr.mxu0 0.0
    %1405 = vmatpush1.msra.mxu0 0.0
    %1406 = vmatprep.subr.mxu0 0.0
    %1407 = vmatpush1.msra.mxu0 0.0
    %1408 = vmatprep.subr.mxu0 0.0
    %1409 = vmatpush1.msra.mxu0 0.0
    %1410 = vmatprep.subr.mxu0 0.0
    %1411 = vmatpush1.msra.mxu0 0.0
    %1412 = vmatprep.subr.mxu0 0.0
    %1413 = vmatpush1.msra.mxu0 0.0
    %1414 = vmatprep.subr.mxu0 0.0
    %1415 = vmatpush1.msra.mxu0 0.0
    %1416 = vmatprep.subr.mxu0 0.0
    %1417 = vmatpush1.msra.mxu0 0.0
    %1418 = vmatprep.subr.mxu0 0.0
    %1419 = vmatpush1.msra.mxu0 0.0
    %1420 = vmatprep.subr.mxu0 0.0
    %1421 = vmatpush1.msra.mxu0 0.0
    %1422 = vmatprep.subr.mxu0 0.0
    %1423 = vmatpush1.msra.mxu0 0.0
    %1424 = vmatprep.subr.mxu0 0.0
    %1425 = vmatpush1.msra.mxu0 0.0
    %1426 = vmatprep.subr.mxu0 0.0
    %1427 = vmatpush1.msra.mxu0 0.0
    %1428 = vmatprep.subr.mxu0 0.0
    %1429 = vmatpush1.msra.mxu0 0.0
    %1430 = vmatprep.subr.mxu0 0.0
    %1431 = vmatpush1.msra.mxu0 0.0
    %1432 = vmatprep.subr.mxu0 0.0
    %1433 = vmatpush1.msra.mxu0 0.0
    %1434 = vmatprep.subr.mxu0 0.0
    %1435 = vmatpush1.msra.mxu0 0.0
    %1436 = vmatprep.mubr.f32.mxu0 0.0
    %1437 = vmatmul.mubr.f32.gmra.mrb[0].mxu0 %v1370
    %v1438 = vpop.f32.mrb[0].mxu0
    %v1439 = vadd.f32 0.0, %v1438
    %v1440 = vpop.f32.mrb[0].mxu0
    %1441 = vdwg.mxu0
    %1444 = vrot.lane.b32.xlu0 %v1068, 8
    %v1445 = vpop.permute.xlu0 %1444
    %1446 = vrot.lane.b32.xlu0 %v1141, 8
    %v1447 = vpop.permute.xlu0 %1446
    %1452 = vrot.lane.b32.xlu0 %v1217, 16
    %v1453 = vpop.permute.xlu0 %1452
    %1454 = vrot.lane.b32.xlu0 %v1293, 16
    %v1455 = vpop.permute.xlu0 %1454
    %1460 = vrot.lane.b32.xlu0 %v1366, 24
    %v1461 = vpop.permute.xlu0 %1460
    %1462 = vrot.lane.b32.xlu0 %v1439, 24
    %v1463 = vpop.permute.xlu0 %1462
    %v1466 = vsel %vm152, %v919, %v1445
    %v1467 = vsel %vm152, %v995, %v1447
    %vm1468 = vcmask 130048
    %v1469 = vsel %vm1468, %v1466, %v1453
    %v1470 = vsel %vm1468, %v1467, %v1455
    %vm1471 = vcmask 195584
    %v1472 = vsel %vm1471, %v1469, %v1461
    %v1473 = vsel %vm1471, %v1470, %v1463
    %1474 = vst.msk [vmem:[#allocation7] sm:$0xff] %vm46, %v1472
    %1475 = vst.msk [vmem:[#allocation7 + $0x8] sm:$0xff] %vm46, %v1473
    // Predicated region
    $region18: #{tpu_custom_call.1} parent=1 // pred_check
      _
    $region19: #{tpu_custom_call.1} parent=1 // pred_check_branch
      %1477 = sbr.rel (0) target = $region21
    $region20: #{tpu_custom_call.1} parent=1 // pred_region
      %s1479 = ssub.s32 256, 256
      %1480 = vsyncadd [#allocation4], %s1479
      %s1481 = sshll.u32 [#allocation7], 4
      %s1482 = int_to_ptr.vmem [resolvable:$true] %s1481
      %1487 = dma.vmem_to_hbm [thread:$0]  %s1482, 256, %s2, [#allocation4], 128, 128, 8
    $region21: #{tpu_custom_call.1} parent=1 // pred_fallthru
      _
    // Predicated region
    $region22: #{tpu_custom_call.1} parent=1 // pred_check
      _
    $region23: #{tpu_custom_call.1} parent=1 // pred_check_branch
      %1489 = sbr.rel (0) target = $region25
    $region24: #{tpu_custom_call.1} parent=1 // pred_region
      %1490 = dma.done [#allocation4], 256
    $region25: #{tpu_custom_call.1} parent=1 // pred_fallthru
      _
    %1491 = vsyncpa [#allocation3], 1
    %1492 = vsyncpa [#allocation6], 1
    %1493 = vsyncpa [#allocation4], 1

</llo_original>
